<compile_context>
chip_gen: v7x
topology: tpu7x:2x2x1
jax: 0.10.0
libtpu: 0.0.40
codegen_flags: <defaults>
</compile_context>

<pallas_src>
import math

import jax
import jax.numpy as jnp
import numpy as np
from jax.experimental import pallas as pl
from jax.experimental.pallas import tpu as pltpu

# ---------------- configuration (matches the PyTorch module defaults) ----------------
N = 2                 # batch
C_IN = 4              # in_channels
C_OUT = 8             # conv1_out_channels
KSIZE = 3             # kernel_size
PAD = 2               # padding (module default)
H = W = 16            # input spatial size
L1 = 128              # linear_out_features1
L2 = 64               # linear_out_features2
POOL = 2              # FractionalMaxPool2d kernel_size
OUT_RATIO = 2.0 / 3.0

HP = H + 2 * PAD                          # 20 padded height
WP = W + 2 * PAD                          # 20 padded width
CONV_H = H + 2 * PAD - KSIZE + 1          # 18
CONV_W = W + 2 * PAD - KSIZE + 1          # 18
POOL_H = int(CONV_H * OUT_RATIO)          # 12  (same int() truncation as torch)
POOL_W = int(CONV_W * OUT_RATIO)          # 12
F1 = C_OUT * POOL_H * POOL_W              # 1152 = linear1 in_features

K_IM2COL = KSIZE * C_IN * WP              # 240  im2col contraction length
F_CONV = C_OUT * CONV_W                   # 144  conv-output lanes (co*18 + w)
F_POOLW = C_OUT * POOL_W                  # 96   column-selected lanes (co*12 + j)


# ------------------------- fractional pool start offsets ------------------------------
def fractional_pool_starts(input_size, output_size, pool_size, u):
    """ATen generate_intervals(); jnp so the offsets stay on device (no recompile,
    no host sync when the fractional-pool random sample changes)."""
    alpha = (input_size - pool_size) / (output_size - 1)
    idx = jnp.arange(output_size - 1, dtype=jnp.float32)
    seq = (jnp.floor((idx + u) * alpha) - jnp.floor(u * alpha)).astype(jnp.int32)
    last = jnp.full((1,), input_size - pool_size, jnp.int32)
    return jnp.concatenate([seq, last])   # (output_size,) int32, values in [0, input-pool]


# --------------------------------- fused Pallas kernel --------------------------------
def fused_forward_kernel(xcol_ref, mconv_ref, bconv_ref, selh_ref, selw_ref,
                         w1_ref, b1_ref, w2_ref, b2_ref,
                         out_ref, flat_ref):
    f32 = jnp.float32

    # conv as ONE MXU matmul (banded weights) + bias + tanh; lanes = co*18 + w
    act = jnp.tanh(jnp.dot(xcol_ref[...], mconv_ref[...], preferred_element_type=f32)
                   + bconv_ref[...])                                  # (36, 144)

    # 2x2 fractional max pool: pairwise max along H (sublanes) and W (lanes)
    pm = jnp.maximum(act[:-1, :], act[1:, :])                         # (35, 144)
    pm = jnp.maximum(pm[:, :-1], pm[:, 1:])                           # (35, 143)
    # (rows/lanes crossing batch or channel boundaries are never selected: starts <= 16)

    # one-hot selection, batched over N: rows of ph/q are (i, n), lanes (co, j)
    ph = jnp.dot(selh_ref[...], pm, preferred_element_type=f32)       # (24, 143)
    q = jnp.dot(ph, selw_ref[...], preferred_element_type=f32)        # (24, 96)

    # flatten (n, i, co, j) -> (n, i*96 + co*12 + j) via 12 direct VMEM scratch stores
    # (linear1 weights are pre-permuted to this lane order).
    for i in range(POOL_H):
        flat_ref[:, i * F_POOLW:(i + 1) * F_POOLW] = q[i * N:(i + 1) * N, :]
    flat = flat_ref[...]                                              # (2, 1152)

    # TODO(synk): nn.Dropout2d treated as identity (inference mode); train-mode
    #             channel-dropout randomness is not reproduced.
    h1 = jnp.tanh(jnp.dot(flat, w1_ref[...], preferred_element_type=f32) + b1_ref[...])
    out_ref[...] = jnp.dot(h1, w2_ref[...], preferred_element_type=f32) + b2_ref[...]


# ------------------------------------- wrapper -----------------------------------------
def _full_spec(shape):
    zeros = (0,) * len(shape)
    return pl.BlockSpec(shape, lambda i, _z=zeros: _z)


def _im2col(x):
    """(N, Cin, 16, 16) -> (N*18, 240); rows = (n, h), lanes = kh*(Cin*WP)+ci*WP+p."""
    xpad = jnp.pad(x, ((0, 0), (0, 0), (PAD, PAD), (PAD, PAD)))
    slabs = jnp.stack([xpad[:, :, kh:kh + CONV_H, :] for kh in range(KSIZE)], axis=0)
    return jnp.transpose(slabs, (1, 3, 0, 2, 4)).reshape(N * CONV_H, K_IM2COL)


def _selection_matrices(h_starts, w_starts):
    """One-hot pool-selection matrices, built per forward in the jitted wrapper."""
    # sel_h rows ordered (i, n): row i*N+n picks pm row n*CONV_H + h_starts[i]
    tgt_h = (h_starts[:, None].astype(jnp.int32)
             + jnp.arange(N, dtype=jnp.int32)[None, :] * CONV_H).reshape(-1, 1)   # (24, 1)
    sel_h = (jnp.arange(N * CONV_H - 1, dtype=jnp.int32)[None, :] == tgt_h
             ).astype(jnp.float32)                                                # (24, 35)
    # sel_w[f, co*12+j] = (f == co*18 + w_starts[j])
    tgt_w = (jnp.arange(C_OUT, dtype=jnp.int32)[:, None] * CONV_W
             + w_starts[None, :].astype(jnp.int32)).reshape(1, -1)                # (1, 96)
    sel_w = (jnp.arange(F_CONV - 1, dtype=jnp.int32)[:, None] == tgt_w
             ).astype(jnp.float32)                                                # (143, 96)
    return sel_h, sel_w


def forward(x_nchw, prep, h_starts, w_starts):
    xcol = _im2col(x_nchw)
    sel_h, sel_w = _selection_matrices(h_starts, w_starts)
    operands = (xcol, prep["mconv"], prep["bconv"], sel_h, sel_w,
                prep["w1"], prep["b1"], prep["w2"], prep["b2"])
    return pl.pallas_call(
        fused_forward_kernel,
        out_shape=jax.ShapeDtypeStruct((N, L2), jnp.float32),
        grid=(1,),
        in_specs=[_full_spec(a.shape) for a in operands],
        out_specs=_full_spec((N, L2)),
        scratch_shapes=[pltpu.VMEM((N, F1), jnp.float32)],
        compiler_params=pltpu.CompilerParams(dimension_semantics=("arbitrary",)),
    )(*operands)


# ----------------------------- parameters & one-time packing ---------------------------
def init_params(key):
    """Canonical parameters in PyTorch layouts (Conv2d OIHW, Linear (out,in))."""
    kc, kcb, k1, k1b, k2, k2b = jax.random.split(key, 6)
    bc = 1.0 / math.sqrt(C_IN * KSIZE * KSIZE)
    b1l = 1.0 / math.sqrt(F1)
    b2l = 1.0 / math.sqrt(L1)
    return {
        "wconv": jax.random.uniform(kc, (C_OUT, C_IN, KSIZE, KSIZE), jnp.float32, -bc, bc),
        "bconv": jax.random.uniform(kcb, (C_OUT,), jnp.float32, -bc, bc),
        "w1": jax.random.uniform(k1, (L1, F1), jnp.float32, -b1l, b1l),
        "b1": jax.random.uniform(k1b, (L1,), jnp.float32, -b1l, b1l),
        "w2": jax.random.uniform(k2, (L2, L1), jnp.float32, -b2l, b2l),
        "b2": jax.random.uniform(k2b, (L2,), jnp.float32, -b2l, b2l),
    }


def prepare_kernel_params(params):
    """One-time host-side repacking into the layouts the fused kernel consumes."""
    wc = np.asarray(params["wconv"], np.float32)          # (Cout, Cin, KH, KW)
    bc = np.asarray(params["bconv"], np.float32)          # (Cout,)
    w1 = np.asarray(params["w1"], np.float32)             # (L1, F1), torch (co,i,j) col order
    b1 = np.asarray(params["b1"], np.float32)
    w2 = np.asarray(params["w2"], np.float32)             # (L2, L1)
    b2 = np.asarray(params["b2"], np.float32)

    # Banded im2col weight: rows = (kh, ci, p) over padded width, cols = (co, w).
    mconv = np.zeros((K_IM2COL, F_CONV), np.float32)
    for kh in range(KSIZE):
        for ci in range(C_IN):
            for kw in range(KSIZE):
                for w_out in range(CONV_W):
                    row = kh * (C_IN * WP) + ci * WP + (w_out + kw)
                    mconv[row, w_out::CONV_W] = wc[:, ci, kh, kw]      # cols co*18 + w_out
    bconv_flat = np.repeat(bc, CONV_W)[None, :]                        # (1, 144)

    # linear1 weight: torch row order (co, i, j) -> kernel flatten order (i, co, j).
    w1_rows = w1.T.reshape(C_OUT, POOL_H, POOL_W, L1)                  # (co, i, j, l)
    w1_perm = np.transpose(w1_rows, (1, 0, 2, 3)).reshape(F1, L1)      # rows = i*96+co*12+j

    return {
        "mconv": jnp.asarray(mconv),
        "bconv": jnp.asarray(bconv_flat),
        "w1": jnp.asarray(w1_perm),
        "b1": jnp.asarray(b1)[None, :],
        "w2": jnp.asarray(w2.T),                                       # (L1, L2)
        "b2": jnp.asarray(b2)[None, :],
    }


# ------------------------------- pure-JAX reference ------------------------------------
def reference_forward(x_nchw, params, h_starts, w_starts):
    hp = jax.lax.Precision.HIGHEST
    conv = jax.lax.conv_general_dilated(
        x_nchw, params["wconv"], window_strides=(1, 1),
        padding=[(PAD, PAD), (PAD, PAD)],
        dimension_numbers=("NCHW", "OIHW", "NCHW"), precision=hp)
    act = jnp.tanh(conv + params["bconv"].reshape(1, C_OUT, 1, 1))
    a = jnp.maximum(act[:, :, :-1, :], act[:, :, 1:, :])
    b = jnp.maximum(a[:, :, :, :-1], a[:, :, :, 1:])
    pooled = b[:, :, h_starts, :][:, :, :, w_starts]                   # 2x2 window maxes
    flat = pooled.reshape(x_nchw.shape[0], -1)                         # torch (c,h,w) flatten
    h1 = jnp.tanh(jnp.dot(flat, params["w1"].T, precision=hp) + params["b1"])
    return jnp.dot(h1, params["w2"].T, precision=hp) + params["b2"]


# ------------------------------------ main ----------------------------------------------
if __name__ == "__main__":
    key = jax.random.PRNGKey(0)
    kx, kp, ku = jax.random.split(key, 3)

    x = jax.random.normal(kx, (N, C_IN, H, W), jnp.float32)
    params = init_params(kp)
    prep = prepare_kernel_params(params)

    # TODO(synk): FractionalMaxPool2d draws independent random samples per (batch, channel)
    #             each forward; here one deterministic sample pair (shared across batch and
    #             channels) drives the exact ATen interval formula.
    u = jax.random.uniform(ku, (2,), jnp.float32)
    h_starts = fractional_pool_starts(CONV_H, POOL_H, POOL, u[0])
    w_starts = fractional_pool_starts(CONV_W, POOL_W, POOL, u[1])

    # Guard (review correctness concern): pairwise max/selection must never cross a
    # batch- or channel-boundary row/lane; holds for the ATen formula with POOL=2.
    hs, ws = np.asarray(h_starts), np.asarray(w_starts)
    assert hs.min() >= 0 and hs.max() <= CONV_H - POOL, hs
    assert ws.min() >= 0 and ws.max() <= CONV_W - POOL, ws

    fwd = jax.jit(forward)
    out = jax.block_until_ready(fwd(x, prep, h_starts, w_starts))
    assert out.shape == (N, L2), out.shape

    ref = jax.block_until_ready(reference_forward(x, params, h_starts, w_starts))
    np.testing.assert_allclose(np.asarray(out), np.asarray(ref), rtol=2e-3, atol=2e-3)

    print("KERNEL_OK")
</pallas_src>

<mosaic_0001>
module attributes {stable_mosaic.version = 11 : i64} {
  func.func @fused_forward_kernel(%arg0: i32, %arg1: memref<36x240xf32, #tpu.memory_space<vmem>>, %arg2: memref<240x144xf32, #tpu.memory_space<vmem>>, %arg3: memref<1x144xf32, #tpu.memory_space<vmem>>, %arg4: memref<24x35xf32, #tpu.memory_space<vmem>>, %arg5: memref<143x96xf32, #tpu.memory_space<vmem>>, %arg6: memref<1152x128xf32, #tpu.memory_space<vmem>>, %arg7: memref<1x128xf32, #tpu.memory_space<vmem>>, %arg8: memref<128x64xf32, #tpu.memory_space<vmem>>, %arg9: memref<1x64xf32, #tpu.memory_space<vmem>>, %arg10: memref<2x64xf32, #tpu.memory_space<vmem>>, %arg11: memref<2x1152xf32, #tpu.memory_space<vmem>>) attributes {dimension_semantics = [#tpu.dimension_semantics<arbitrary>], iteration_bounds = array<i64: 1>, scalar_prefetch = 0 : i64, scratch_operands = 1 : i64, tpu.core_type = #tpu.core_type<tc>, window_params = [{pipeline_mode = #tpu.pipeline_mode<synchronous>, transform_indices = @transform_0, window_bounds = array<i64: 36, 240>}, {pipeline_mode = #tpu.pipeline_mode<synchronous>, transform_indices = @transform_1, window_bounds = array<i64: 240, 144>}, {pipeline_mode = #tpu.pipeline_mode<synchronous>, transform_indices = @transform_2, window_bounds = array<i64: 1, 144>}, {pipeline_mode = #tpu.pipeline_mode<synchronous>, transform_indices = @transform_3, window_bounds = array<i64: 24, 35>}, {pipeline_mode = #tpu.pipeline_mode<synchronous>, transform_indices = @transform_4, window_bounds = array<i64: 143, 96>}, {pipeline_mode = #tpu.pipeline_mode<synchronous>, transform_indices = @transform_5, window_bounds = array<i64: 1152, 128>}, {pipeline_mode = #tpu.pipeline_mode<synchronous>, transform_indices = @transform_6, window_bounds = array<i64: 1, 128>}, {pipeline_mode = #tpu.pipeline_mode<synchronous>, transform_indices = @transform_7, window_bounds = array<i64: 128, 64>}, {pipeline_mode = #tpu.pipeline_mode<synchronous>, transform_indices = @transform_8, window_bounds = array<i64: 1, 64>}, {pipeline_mode = #tpu.pipeline_mode<synchronous>, transform_indices = @transform_9, window_bounds = array<i64: 2, 64>}]} {
    %c0 = arith.constant 0 : index
    %c0_0 = arith.constant 0 : index
    %0 = vector.load %arg1[%c0, %c0_0] : memref<36x240xf32, #tpu.memory_space<vmem>>, vector<36x240xf32>
    %c0_1 = arith.constant 0 : index
    %c0_2 = arith.constant 0 : index
    %1 = vector.load %arg2[%c0_1, %c0_2] : memref<240x144xf32, #tpu.memory_space<vmem>>, vector<240x144xf32>
    %cst = arith.constant dense<0.000000e+00> : vector<36x144xf32>
    %2 = tpu.matmul %0, %1, %cst {dimension_numbers = #tpu.dot_dimension_numbers<[1], [0], [0], [1], [0, 0, 1, 1], [], []>} : vector<36x240xf32>, vector<240x144xf32>, vector<36x144xf32> -> vector<36x144xf32>
    %c0_3 = arith.constant 0 : index
    %c0_4 = arith.constant 0 : index
    %3 = vector.load %arg3[%c0_3, %c0_4] : memref<1x144xf32, #tpu.memory_space<vmem>>, vector<1x144xf32>
    %4 = vector.broadcast %3 : vector<1x144xf32> to vector<36x144xf32>
    %5 = arith.addf %2, %4 : vector<36x144xf32>
    %6 = math.tanh %5 : vector<36x144xf32>
    %7 = vector.extract_strided_slice %6 {offsets = [0, 0], sizes = [35, 144], strides = [1, 1]} : vector<36x144xf32> to vector<35x144xf32>
    %8 = vector.extract_strided_slice %6 {offsets = [1, 0], sizes = [35, 144], strides = [1, 1]} : vector<36x144xf32> to vector<35x144xf32>
    %9 = arith.maximumf %7, %8 : vector<35x144xf32>
    %10 = vector.extract_strided_slice %9 {offsets = [0, 0], sizes = [35, 143], strides = [1, 1]} : vector<35x144xf32> to vector<35x143xf32>
    %11 = vector.extract_strided_slice %9 {offsets = [0, 1], sizes = [35, 143], strides = [1, 1]} : vector<35x144xf32> to vector<35x143xf32>
    %12 = arith.maximumf %10, %11 : vector<35x143xf32>
    %c0_5 = arith.constant 0 : index
    %c0_6 = arith.constant 0 : index
    %13 = vector.load %arg4[%c0_5, %c0_6] : memref<24x35xf32, #tpu.memory_space<vmem>>, vector<24x35xf32>
    %cst_7 = arith.constant dense<0.000000e+00> : vector<24x143xf32>
    %14 = tpu.matmul %13, %12, %cst_7 {dimension_numbers = #tpu.dot_dimension_numbers<[1], [0], [0], [1], [0, 0, 1, 1], [], []>} : vector<24x35xf32>, vector<35x143xf32>, vector<24x143xf32> -> vector<24x143xf32>
    %c0_8 = arith.constant 0 : index
    %c0_9 = arith.constant 0 : index
    %15 = vector.load %arg5[%c0_8, %c0_9] : memref<143x96xf32, #tpu.memory_space<vmem>>, vector<143x96xf32>
    %cst_10 = arith.constant dense<0.000000e+00> : vector<24x96xf32>
    %16 = tpu.matmul %14, %15, %cst_10 {dimension_numbers = #tpu.dot_dimension_numbers<[1], [0], [0], [1], [0, 0, 1, 1], [], []>} : vector<24x143xf32>, vector<143x96xf32>, vector<24x96xf32> -> vector<24x96xf32>
    %17 = vector.extract_strided_slice %16 {offsets = [0, 0], sizes = [2, 96], strides = [1, 1]} : vector<24x96xf32> to vector<2x96xf32>
    %c0_11 = arith.constant 0 : index
    %c0_12 = arith.constant 0 : index
    %18 = vector.load %arg11[%c0_11, %c0_12] : memref<2x1152xf32, #tpu.memory_space<vmem>>, vector<2x96xf32>
    tpu.vector_store %arg11[%c0_11, %c0_12], %17 {strides = array<i32>} : memref<2x1152xf32, #tpu.memory_space<vmem>>, vector<2x96xf32>,
    %19 = vector.extract_strided_slice %16 {offsets = [2, 0], sizes = [2, 96], strides = [1, 1]} : vector<24x96xf32> to vector<2x96xf32>
    %c0_13 = arith.constant 0 : index
    %c96 = arith.constant 96 : index
    %20 = vector.load %arg11[%c0_13, %c96] : memref<2x1152xf32, #tpu.memory_space<vmem>>, vector<2x96xf32>
    tpu.vector_store %arg11[%c0_13, %c96], %19 {strides = array<i32>} : memref<2x1152xf32, #tpu.memory_space<vmem>>, vector<2x96xf32>,
    %21 = vector.extract_strided_slice %16 {offsets = [4, 0], sizes = [2, 96], strides = [1, 1]} : vector<24x96xf32> to vector<2x96xf32>
    %c0_14 = arith.constant 0 : index
    %c192 = arith.constant 192 : index
    %22 = vector.load %arg11[%c0_14, %c192] : memref<2x1152xf32, #tpu.memory_space<vmem>>, vector<2x96xf32>
    tpu.vector_store %arg11[%c0_14, %c192], %21 {strides = array<i32>} : memref<2x1152xf32, #tpu.memory_space<vmem>>, vector<2x96xf32>,
    %23 = vector.extract_strided_slice %16 {offsets = [6, 0], sizes = [2, 96], strides = [1, 1]} : vector<24x96xf32> to vector<2x96xf32>
    %c0_15 = arith.constant 0 : index
    %c288 = arith.constant 288 : index
    %24 = vector.load %arg11[%c0_15, %c288] : memref<2x1152xf32, #tpu.memory_space<vmem>>, vector<2x96xf32>
    tpu.vector_store %arg11[%c0_15, %c288], %23 {strides = array<i32>} : memref<2x1152xf32, #tpu.memory_space<vmem>>, vector<2x96xf32>,
    %25 = vector.extract_strided_slice %16 {offsets = [8, 0], sizes = [2, 96], strides = [1, 1]} : vector<24x96xf32> to vector<2x96xf32>
    %c0_16 = arith.constant 0 : index
    %c384 = arith.constant 384 : index
    %26 = vector.load %arg11[%c0_16, %c384] : memref<2x1152xf32, #tpu.memory_space<vmem>>, vector<2x96xf32>
    tpu.vector_store %arg11[%c0_16, %c384], %25 {strides = array<i32>} : memref<2x1152xf32, #tpu.memory_space<vmem>>, vector<2x96xf32>,
    %27 = vector.extract_strided_slice %16 {offsets = [10, 0], sizes = [2, 96], strides = [1, 1]} : vector<24x96xf32> to vector<2x96xf32>
    %c0_17 = arith.constant 0 : index
    %c480 = arith.constant 480 : index
    %28 = vector.load %arg11[%c0_17, %c480] : memref<2x1152xf32, #tpu.memory_space<vmem>>, vector<2x96xf32>
    tpu.vector_store %arg11[%c0_17, %c480], %27 {strides = array<i32>} : memref<2x1152xf32, #tpu.memory_space<vmem>>, vector<2x96xf32>,
    %29 = vector.extract_strided_slice %16 {offsets = [12, 0], sizes = [2, 96], strides = [1, 1]} : vector<24x96xf32> to vector<2x96xf32>
    %c0_18 = arith.constant 0 : index
    %c576 = arith.constant 576 : index
    %30 = vector.load %arg11[%c0_18, %c576] : memref<2x1152xf32, #tpu.memory_space<vmem>>, vector<2x96xf32>
    tpu.vector_store %arg11[%c0_18, %c576], %29 {strides = array<i32>} : memref<2x1152xf32, #tpu.memory_space<vmem>>, vector<2x96xf32>,
    %31 = vector.extract_strided_slice %16 {offsets = [14, 0], sizes = [2, 96], strides = [1, 1]} : vector<24x96xf32> to vector<2x96xf32>
    %c0_19 = arith.constant 0 : index
    %c672 = arith.constant 672 : index
    %32 = vector.load %arg11[%c0_19, %c672] : memref<2x1152xf32, #tpu.memory_space<vmem>>, vector<2x96xf32>
    tpu.vector_store %arg11[%c0_19, %c672], %31 {strides = array<i32>} : memref<2x1152xf32, #tpu.memory_space<vmem>>, vector<2x96xf32>,
    %33 = vector.extract_strided_slice %16 {offsets = [16, 0], sizes = [2, 96], strides = [1, 1]} : vector<24x96xf32> to vector<2x96xf32>
    %c0_20 = arith.constant 0 : index
    %c768 = arith.constant 768 : index
    %34 = vector.load %arg11[%c0_20, %c768] : memref<2x1152xf32, #tpu.memory_space<vmem>>, vector<2x96xf32>
    tpu.vector_store %arg11[%c0_20, %c768], %33 {strides = array<i32>} : memref<2x1152xf32, #tpu.memory_space<vmem>>, vector<2x96xf32>,
    %35 = vector.extract_strided_slice %16 {offsets = [18, 0], sizes = [2, 96], strides = [1, 1]} : vector<24x96xf32> to vector<2x96xf32>
    %c0_21 = arith.constant 0 : index
    %c864 = arith.constant 864 : index
    %36 = vector.load %arg11[%c0_21, %c864] : memref<2x1152xf32, #tpu.memory_space<vmem>>, vector<2x96xf32>
    tpu.vector_store %arg11[%c0_21, %c864], %35 {strides = array<i32>} : memref<2x1152xf32, #tpu.memory_space<vmem>>, vector<2x96xf32>,
    %37 = vector.extract_strided_slice %16 {offsets = [20, 0], sizes = [2, 96], strides = [1, 1]} : vector<24x96xf32> to vector<2x96xf32>
    %c0_22 = arith.constant 0 : index
    %c960 = arith.constant 960 : index
    %38 = vector.load %arg11[%c0_22, %c960] : memref<2x1152xf32, #tpu.memory_space<vmem>>, vector<2x96xf32>
    tpu.vector_store %arg11[%c0_22, %c960], %37 {strides = array<i32>} : memref<2x1152xf32, #tpu.memory_space<vmem>>, vector<2x96xf32>,
    %39 = vector.extract_strided_slice %16 {offsets = [22, 0], sizes = [2, 96], strides = [1, 1]} : vector<24x96xf32> to vector<2x96xf32>
    %c0_23 = arith.constant 0 : index
    %c1056 = arith.constant 1056 : index
    %40 = vector.load %arg11[%c0_23, %c1056] : memref<2x1152xf32, #tpu.memory_space<vmem>>, vector<2x96xf32>
    tpu.vector_store %arg11[%c0_23, %c1056], %39 {strides = array<i32>} : memref<2x1152xf32, #tpu.memory_space<vmem>>, vector<2x96xf32>,
    %c0_24 = arith.constant 0 : index
    %c0_25 = arith.constant 0 : index
    %41 = vector.load %arg11[%c0_24, %c0_25] : memref<2x1152xf32, #tpu.memory_space<vmem>>, vector<2x1152xf32>
    %c0_26 = arith.constant 0 : index
    %c0_27 = arith.constant 0 : index
    %42 = vector.load %arg6[%c0_26, %c0_27] : memref<1152x128xf32, #tpu.memory_space<vmem>>, vector<1152x128xf32>
    %cst_28 = arith.constant dense<0.000000e+00> : vector<2x128xf32>
    %43 = tpu.matmul %41, %42, %cst_28 {dimension_numbers = #tpu.dot_dimension_numbers<[1], [0], [0], [1], [0, 0, 1, 1], [], []>} : vector<2x1152xf32>, vector<1152x128xf32>, vector<2x128xf32> -> vector<2x128xf32>
    %c0_29 = arith.constant 0 : index
    %c0_30 = arith.constant 0 : index
    %44 = vector.load %arg7[%c0_29, %c0_30] : memref<1x128xf32, #tpu.memory_space<vmem>>, vector<1x128xf32>
    %45 = vector.broadcast %44 : vector<1x128xf32> to vector<2x128xf32>
    %46 = arith.addf %43, %45 : vector<2x128xf32>
    %47 = math.tanh %46 : vector<2x128xf32>
    %c0_31 = arith.constant 0 : index
    %c0_32 = arith.constant 0 : index
    %48 = vector.load %arg8[%c0_31, %c0_32] : memref<128x64xf32, #tpu.memory_space<vmem>>, vector<128x64xf32>
    %cst_33 = arith.constant dense<0.000000e+00> : vector<2x64xf32>
    %49 = tpu.matmul %47, %48, %cst_33 {dimension_numbers = #tpu.dot_dimension_numbers<[1], [0], [0], [1], [0, 0, 1, 1], [], []>} : vector<2x128xf32>, vector<128x64xf32>, vector<2x64xf32> -> vector<2x64xf32>
    %c0_34 = arith.constant 0 : index
    %c0_35 = arith.constant 0 : index
    %50 = vector.load %arg9[%c0_34, %c0_35] : memref<1x64xf32, #tpu.memory_space<vmem>>, vector<1x64xf32>
    %51 = vector.broadcast %50 : vector<1x64xf32> to vector<2x64xf32>
    %52 = arith.addf %49, %51 : vector<2x64xf32>
    %c0_36 = arith.constant 0 : index
    %c0_37 = arith.constant 0 : index
    %53 = vector.load %arg10[%c0_36, %c0_37] : memref<2x64xf32, #tpu.memory_space<vmem>>, vector<2x64xf32>
    tpu.vector_store %arg10[%c0_36, %c0_37], %52 {strides = array<i32>} : memref<2x64xf32, #tpu.memory_space<vmem>>, vector<2x64xf32>,
    return
  }
  func.func @transform_0(%arg0: i32) -> (i32, i32) {
    %c0_i32 = arith.constant 0 : i32
    %c0_i32_0 = arith.constant 0 : i32
    %c0_i32_1 = arith.constant 0 : i32
    return %c0_i32, %c0_i32_0 : i32, i32
  }
  func.func @transform_1(%arg0: i32) -> (i32, i32) {
    %c0_i32 = arith.constant 0 : i32
    %c0_i32_0 = arith.constant 0 : i32
    %c0_i32_1 = arith.constant 0 : i32
    return %c0_i32, %c0_i32_0 : i32, i32
  }
  func.func @transform_2(%arg0: i32) -> (i32, i32) {
    %c0_i32 = arith.constant 0 : i32
    %c0_i32_0 = arith.constant 0 : i32
    %c0_i32_1 = arith.constant 0 : i32
    return %c0_i32, %c0_i32_0 : i32, i32
  }
  func.func @transform_3(%arg0: i32) -> (i32, i32) {
    %c0_i32 = arith.constant 0 : i32
    %c0_i32_0 = arith.constant 0 : i32
    %c0_i32_1 = arith.constant 0 : i32
    return %c0_i32, %c0_i32_0 : i32, i32
  }
  func.func @transform_4(%arg0: i32) -> (i32, i32) {
    %c0_i32 = arith.constant 0 : i32
    %c0_i32_0 = arith.constant 0 : i32
    %c0_i32_1 = arith.constant 0 : i32
    return %c0_i32, %c0_i32_0 : i32, i32
  }
  func.func @transform_5(%arg0: i32) -> (i32, i32) {
    %c0_i32 = arith.constant 0 : i32
    %c0_i32_0 = arith.constant 0 : i32
    %c0_i32_1 = arith.constant 0 : i32
    return %c0_i32, %c0_i32_0 : i32, i32
  }
  func.func @transform_6(%arg0: i32) -> (i32, i32) {
    %c0_i32 = arith.constant 0 : i32
    %c0_i32_0 = arith.constant 0 : i32
    %c0_i32_1 = arith.constant 0 : i32
    return %c0_i32, %c0_i32_0 : i32, i32
  }
  func.func @transform_7(%arg0: i32) -> (i32, i32) {
    %c0_i32 = arith.constant 0 : i32
    %c0_i32_0 = arith.constant 0 : i32
    %c0_i32_1 = arith.constant 0 : i32
    return %c0_i32, %c0_i32_0 : i32, i32
  }
  func.func @transform_8(%arg0: i32) -> (i32, i32) {
    %c0_i32 = arith.constant 0 : i32
    %c0_i32_0 = arith.constant 0 : i32
    %c0_i32_1 = arith.constant 0 : i32
    return %c0_i32, %c0_i32_0 : i32, i32
  }
  func.func @transform_9(%arg0: i32) -> (i32, i32) {
    %c0_i32 = arith.constant 0 : i32
    %c0_i32_0 = arith.constant 0 : i32
    %c0_i32_1 = arith.constant 0 : i32
    return %c0_i32, %c0_i32_0 : i32, i32
  }
}

</mosaic_0001>

<llo_original>
// kernel: forward.1
$region0: #{forward.1}
  #allocation0 [shape = 'u32[]', space=smem, size = 0x4, offset = 0x4, fixed_abs, tag = 'smem constant byte address 0x4 - core index']
  #allocation1 [shape = 'u32[144,128]{1,0:T(1,128)}', space=vmem, size = 0x12000, scoped, tag = 'internal scratch']
  #allocation2 [shape = 'f32[2,1152]{1,0:T(2,128)}', space=vmem, size = 0x2400, scoped, tag = 'scratch operand']
  %s0 = inlined_call_operand.vmem [shape: f32[36,240], index: 0, kind: input, shape index: {}]
  %s1 = inlined_call_operand.vmem [shape: f32[240,144], index: 1, kind: input, shape index: {}]
  %s2 = inlined_call_operand.vmem [shape: f32[1,144], index: 2, kind: input, shape index: {}]
  %s3 = inlined_call_operand.vmem [shape: f32[24,35], index: 3, kind: input, shape index: {}]
  %s4 = inlined_call_operand.vmem [shape: f32[143,96], index: 4, kind: input, shape index: {}]
  %s5 = inlined_call_operand.vmem [shape: f32[1152,128], index: 5, kind: input, shape index: {}]
  %s6 = inlined_call_operand.vmem [shape: f32[1,128], index: 6, kind: input, shape index: {}]
  %s7 = inlined_call_operand.vmem [shape: f32[128,64], index: 7, kind: input, shape index: {}]
  %s8 = inlined_call_operand.vmem [shape: f32[1,64], index: 8, kind: input, shape index: {}]
  %s9 = inlined_call_operand.hbm [shape: f32[2,64], index: 9, kind: output, shape index: {}]
  %s10 = sld [smem:[#allocation0]]
  $region46: #{forward.1} parent=0
    _
  %s12 = ssub.s32 1, %s10
  %s13 = scalar_select 0, %s12, %s10
  $region1: #{forward.1} parent=0
    #allocation3 [shape = 'u8[1024]{0}', space=vmem, size = 0x400, scoped, tag = 'output window, operand 0, single buffered']
    #allocation4 [shape = 's32[1]{0}', space=sflag, size = 0x4, scoped, tag = 'scoped memory for forward.1']
    %14 = vsyncpa [#allocation4], 0
    // Predicated region
    $region2: #{forward.1} parent=1 // pred_check
      _
    $region3: #{forward.1} parent=1 // pred_check_branch
      %16 = sbr.rel (0) target = $region5
    $region4: #{forward.1} parent=1 // pred_region
      _
    $region5: #{forward.1} parent=1 // pred_fallthru
      _
    // Predicated region
    $region6: #{forward.1} parent=1 // pred_check
      _
    $region7: #{forward.1} parent=1 // pred_check_branch
      %18 = sbr.rel (0) target = $region9
    $region8: #{forward.1} parent=1 // pred_region
      _
    $region9: #{forward.1} parent=1 // pred_fallthru
      _
    // Predicated region
    $region10: #{forward.1} parent=1 // pred_check
      _
    $region11: #{forward.1} parent=1 // pred_check_branch
      %20 = sbr.rel (0) target = $region13
    $region12: #{forward.1} parent=1 // pred_region
      _
    $region13: #{forward.1} parent=1 // pred_fallthru
      _
    // Predicated region
    $region14: #{forward.1} parent=1 // pred_check
      _
    $region15: #{forward.1} parent=1 // pred_check_branch
      %22 = sbr.rel (0) target = $region17
    $region16: #{forward.1} parent=1 // pred_region
      _
    $region17: #{forward.1} parent=1 // pred_fallthru
      _
    // Predicated region
    $region18: #{forward.1} parent=1 // pred_check
      _
    $region19: #{forward.1} parent=1 // pred_check_branch
      %24 = sbr.rel (0) target = $region21
    $region20: #{forward.1} parent=1 // pred_region
      _
    $region21: #{forward.1} parent=1 // pred_fallthru
      _
    // Predicated region
    $region22: #{forward.1} parent=1 // pred_check
      _
    $region23: #{forward.1} parent=1 // pred_check_branch
      %26 = sbr.rel (0) target = $region25
    $region24: #{forward.1} parent=1 // pred_region
      _
    $region25: #{forward.1} parent=1 // pred_fallthru
      _
    // Predicated region
    $region26: #{forward.1} parent=1 // pred_check
      _
    $region27: #{forward.1} parent=1 // pred_check_branch
      %28 = sbr.rel (0) target = $region29
    $region28: #{forward.1} parent=1 // pred_region
      _
    $region29: #{forward.1} parent=1 // pred_fallthru
      _
    // Predicated region
    $region30: #{forward.1} parent=1 // pred_check
      _
    $region31: #{forward.1} parent=1 // pred_check_branch
      %30 = sbr.rel (0) target = $region33
    $region32: #{forward.1} parent=1 // pred_region
      _
    $region33: #{forward.1} parent=1 // pred_fallthru
      _
    // Predicated region
    $region34: #{forward.1} parent=1 // pred_check
      _
    $region35: #{forward.1} parent=1 // pred_check_branch
      %32 = sbr.rel (0) target = $region37
    $region36: #{forward.1} parent=1 // pred_region
      _
    $region37: #{forward.1} parent=1 // pred_fallthru
      _
    %v33 = vld [vmem:[%s0] sm:$0xff]
    %v34 = vld [vmem:[%s0 + $0x8] sm:$0xff]
    %v35 = vld [vmem:[%s0 + $0x10] sm:$0xff]
    %v36 = vld [vmem:[%s0 + $0x18] sm:$0xff]
    %v37 = vld [vmem:[%s0 + $0x20] sm:$0xff]
    %v38 = vld [vmem:[%s0 + $0x28] sm:$0xff]
    %v39 = vld [vmem:[%s0 + $0x30] sm:$0xff]
    %v40 = vld [vmem:[%s0 + $0x38] sm:$0xff]
    %v41 = vld [vmem:[%s0 + $0x40] sm:$0xf]
    %v42 = vld [vmem:[%s0 + $0x48] sm:$0xf]
    %v43 = vld [vmem:[%s1] sm:$0xff]
    %v44 = vld [vmem:[%s1 + $0x8] sm:$0xff]
    %v45 = vld [vmem:[%s1 + $0x10] sm:$0xff]
    %v46 = vld [vmem:[%s1 + $0x18] sm:$0xff]
    %v47 = vld [vmem:[%s1 + $0x20] sm:$0xff]
    %v48 = vld [vmem:[%s1 + $0x28] sm:$0xff]
    %v49 = vld [vmem:[%s1 + $0x30] sm:$0xff]
    %v50 = vld [vmem:[%s1 + $0x38] sm:$0xff]
    %v51 = vld [vmem:[%s1 + $0x40] sm:$0xff]
    %v52 = vld [vmem:[%s1 + $0x48] sm:$0xff]
    %v53 = vld [vmem:[%s1 + $0x50] sm:$0xff]
    %v54 = vld [vmem:[%s1 + $0x58] sm:$0xff]
    %v55 = vld [vmem:[%s1 + $0x60] sm:$0xff]
    %v56 = vld [vmem:[%s1 + $0x68] sm:$0xff]
    %v57 = vld [vmem:[%s1 + $0x70] sm:$0xff]
    %v58 = vld [vmem:[%s1 + $0x78] sm:$0xff]
    %v59 = vld [vmem:[%s1 + $0x80] sm:$0xff]
    %v60 = vld [vmem:[%s1 + $0x88] sm:$0xff]
    %v61 = vld [vmem:[%s1 + $0x90] sm:$0xff]
    %v62 = vld [vmem:[%s1 + $0x98] sm:$0xff]
    %v63 = vld [vmem:[%s1 + $0xa0] sm:$0xff]
    %v64 = vld [vmem:[%s1 + $0xa8] sm:$0xff]
    %v65 = vld [vmem:[%s1 + $0xb0] sm:$0xff]
    %v66 = vld [vmem:[%s1 + $0xb8] sm:$0xff]
    %v67 = vld [vmem:[%s1 + $0xc0] sm:$0xff]
    %v68 = vld [vmem:[%s1 + $0xc8] sm:$0xff]
    %v69 = vld [vmem:[%s1 + $0xd0] sm:$0xff]
    %v70 = vld [vmem:[%s1 + $0xd8] sm:$0xff]
    %v71 = vld [vmem:[%s1 + $0xe0] sm:$0xff]
    %v72 = vld [vmem:[%s1 + $0xe8] sm:$0xff]
    %v73 = vld [vmem:[%s1 + $0xf0] sm:$0xff]
    %v74 = vld [vmem:[%s1 + $0xf8] sm:$0xff]
    %v75 = vld [vmem:[%s1 + $0x100] sm:$0xff]
    %v76 = vld [vmem:[%s1 + $0x108] sm:$0xff]
    %v77 = vld [vmem:[%s1 + $0x110] sm:$0xff]
    %v78 = vld [vmem:[%s1 + $0x118] sm:$0xff]
    %v79 = vld [vmem:[%s1 + $0x120] sm:$0xff]
    %v80 = vld [vmem:[%s1 + $0x128] sm:$0xff]
    %v81 = vld [vmem:[%s1 + $0x130] sm:$0xff]
    %v82 = vld [vmem:[%s1 + $0x138] sm:$0xff]
    %v83 = vld [vmem:[%s1 + $0x140] sm:$0xff]
    %v84 = vld [vmem:[%s1 + $0x148] sm:$0xff]
    %v85 = vld [vmem:[%s1 + $0x150] sm:$0xff]
    %v86 = vld [vmem:[%s1 + $0x158] sm:$0xff]
    %v87 = vld [vmem:[%s1 + $0x160] sm:$0xff]
    %v88 = vld [vmem:[%s1 + $0x168] sm:$0xff]
    %v89 = vld [vmem:[%s1 + $0x170] sm:$0xff]
    %v90 = vld [vmem:[%s1 + $0x178] sm:$0xff]
    %v91 = vld [vmem:[%s1 + $0x180] sm:$0xff]
    %v92 = vld [vmem:[%s1 + $0x188] sm:$0xff]
    %v93 = vld [vmem:[%s1 + $0x190] sm:$0xff]
    %v94 = vld [vmem:[%s1 + $0x198] sm:$0xff]
    %v95 = vld [vmem:[%s1 + $0x1a0] sm:$0xff]
    %v96 = vld [vmem:[%s1 + $0x1a8] sm:$0xff]
    %v97 = vld [vmem:[%s1 + $0x1b0] sm:$0xff]
    %v98 = vld [vmem:[%s1 + $0x1b8] sm:$0xff]
    %v99 = vld [vmem:[%s1 + $0x1c0] sm:$0xff]
    %v100 = vld [vmem:[%s1 + $0x1c8] sm:$0xff]
    %v101 = vld [vmem:[%s1 + $0x1d0] sm:$0xff]
    %v102 = vld [vmem:[%s1 + $0x1d8] sm:$0xff]
    %v103 = vld [vmem:[%s2] sm:$0x3]
    %v105 = vlaneseq
    %v106 = vshrl.u32 %v105, 7
    %v107 = vsub.s32 0, %v106
    %v108 = vrot.slane %v103, %v107
    %v109 = vlaneseq
    %v110 = vshrl.u32 %v109, 7
    %v111 = vsub.s32 1, %v110
    %v112 = vrot.slane %v103, %v111
    %vm115 = vcmask 916480
    %v117 = vsel %vm115, %v34, 0
    %v120 = vsel %vm115, %v36, 0
    %v123 = vsel %vm115, %v38, 0
    %v126 = vsel %vm115, %v40, 0
    %v129 = vsel %vm115, %v42, 0
    %131 = vmatprep.subr.mxu0 %v44
    %132 = vmatpush1.msra.mxu0 %v43
    %133 = vmatprep.subr.mxu0 %v46
    %134 = vmatpush1.msra.mxu0 %v45
    %135 = vmatprep.subr.mxu0 %v48
    %136 = vmatpush1.msra.mxu0 %v47
    %137 = vmatprep.subr.mxu0 %v50
    %138 = vmatpush1.msra.mxu0 %v49
    %139 = vmatprep.subr.mxu0 %v52
    %140 = vmatpush1.msra.mxu0 %v51
    %141 = vmatprep.subr.mxu0 %v54
    %142 = vmatpush1.msra.mxu0 %v53
    %143 = vmatprep.subr.mxu0 %v56
    %144 = vmatpush1.msra.mxu0 %v55
    %145 = vmatprep.subr.mxu0 %v58
    %146 = vmatpush1.msra.mxu0 %v57
    %147 = vmatprep.subr.mxu0 %v60
    %148 = vmatpush1.msra.mxu0 %v59
    %149 = vmatprep.subr.mxu0 %v62
    %150 = vmatpush1.msra.mxu0 %v61
    %151 = vmatprep.subr.mxu0 %v64
    %152 = vmatpush1.msra.mxu0 %v63
    %153 = vmatprep.subr.mxu0 %v66
    %154 = vmatpush1.msra.mxu0 %v65
    %155 = vmatprep.subr.mxu0 %v68
    %156 = vmatpush1.msra.mxu0 %v67
    %157 = vmatprep.subr.mxu0 %v70
    %158 = vmatpush1.msra.mxu0 %v69
    %159 = vmatprep.subr.mxu0 %v72
    %160 = vmatpush1.msra.mxu0 %v71
    %161 = vmatprep.subr.mxu0 %v74
    %162 = vmatpush1.msra.mxu0 %v73
    %163 = vmatprep.subr.mxu0 %v76
    %164 = vmatpush1.msra.mxu0 %v75
    %165 = vmatprep.subr.mxu0 %v78
    %166 = vmatpush1.msra.mxu0 %v77
    %167 = vmatprep.subr.mxu0 %v80
    %168 = vmatpush1.msra.mxu0 %v79
    %169 = vmatprep.subr.mxu0 %v82
    %170 = vmatpush1.msra.mxu0 %v81
    %171 = vmatprep.subr.mxu0 %v84
    %172 = vmatpush1.msra.mxu0 %v83
    %173 = vmatprep.subr.mxu0 %v86
    %174 = vmatpush1.msra.mxu0 %v85
    %175 = vmatprep.subr.mxu0 %v88
    %176 = vmatpush1.msra.mxu0 %v87
    %177 = vmatprep.subr.mxu0 %v90
    %178 = vmatpush1.msra.mxu0 %v89
    %179 = vmatprep.subr.mxu0 %v92
    %180 = vmatpush1.msra.mxu0 %v91
    %181 = vmatprep.subr.mxu0 %v94
    %182 = vmatpush1.msra.mxu0 %v93
    %183 = vmatprep.subr.mxu0 %v96
    %184 = vmatpush1.msra.mxu0 %v95
    %185 = vmatprep.subr.mxu0 %v98
    %186 = vmatpush1.msra.mxu0 %v97
    %187 = vmatprep.subr.mxu0 %v100
    %188 = vmatpush1.msra.mxu0 %v99
    %189 = vmatprep.subr.mxu0 %v102
    %190 = vmatpush1.msra.mxu0 %v101
    %191 = vmatprep.subr.mxu0 0.0
    %192 = vmatpush1.msra.mxu0 0.0
    %193 = vmatprep.subr.mxu0 0.0
    %194 = vmatpush1.msra.mxu0 0.0
    %195 = vmatprep.mubr.f32.mxu0 %v117
    %196 = vmatmul.mubr.f32.gmra.mrb[0].mxu0 %v33
    %v197 = vpop.f32.mrb[0].mxu0
    %v198 = vadd.f32 %v108, %v197
    %v199 = vpop.f32.mrb[0].mxu0
    %v200 = vadd.f32 %v112, %v199
    %201 = vmatprep.mubr.f32.mxu0 %v120
    %202 = vmatmul.mubr.f32.gmra.mrb[0].mxu0 %v35
    %v203 = vpop.f32.mrb[0].mxu0
    %v204 = vadd.f32 %v108, %v203
    %v205 = vpop.f32.mrb[0].mxu0
    %v206 = vadd.f32 %v112, %v205
    %207 = vmatprep.mubr.f32.mxu0 %v123
    %208 = vmatmul.mubr.f32.gmra.mrb[0].mxu0 %v37
    %v209 = vpop.f32.mrb[0].mxu0
    %v210 = vadd.f32 %v108, %v209
    %v211 = vpop.f32.mrb[0].mxu0
    %v212 = vadd.f32 %v112, %v211
    %213 = vmatprep.mubr.f32.mxu0 %v126
    %214 = vmatmul.mubr.f32.gmra.mrb[0].mxu0 %v39
    %v215 = vpop.f32.mrb[0].mxu0
    %v216 = vadd.f32 %v108, %v215
    %v217 = vpop.f32.mrb[0].mxu0
    %v218 = vadd.f32 %v112, %v217
    %219 = vmatprep.mubr.f32.mxu0 %v129
    %220 = vmatmul.mubr.f32.gmra.mrb[0].mxu0 %v41
    %v221 = vpop.f32.mrb[0].mxu0
    %v222 = vadd.f32 %v108, %v221
    %v223 = vpop.f32.mrb[0].mxu0
    %v224 = vadd.f32 %v112, %v223
    %225 = vdwg.mxu0
    %v226 = vtanh.pop %v198
    %v227 = vtanh.pop %v200
    %v228 = vtanh.pop %v204
    %v229 = vtanh.pop %v206
    %v230 = vtanh.pop %v210
    %v231 = vtanh.pop %v212
    %v232 = vtanh.pop %v216
    %v233 = vtanh.pop %v218
    %v234 = vtanh.pop %v222
    %v235 = vtanh.pop %v224
    %vm246 = vcmask 1046528
    %v247 = vrot.slane %v226, 1
    %v248 = vrot.slane %v228, 1
    %v249 = vsel %vm246, %v247, %v248
    %v250 = vrot.slane %v227, 1
    %v251 = vrot.slane %v229, 1
    %v252 = vsel %vm246, %v250, %v251
    %v253 = vrot.slane %v230, 1
    %v254 = vsel %vm246, %v248, %v253
    %v255 = vrot.slane %v231, 1
    %v256 = vsel %vm246, %v251, %v255
    %v257 = vrot.slane %v232, 1
    %v258 = vsel %vm246, %v253, %v257
    %v259 = vrot.slane %v233, 1
    %v260 = vsel %vm246, %v255, %v259
    %v261 = vrot.slane %v234, 1
    %v262 = vsel %vm246, %v257, %v261
    %v263 = vrot.slane %v235, 1
    %v264 = vsel %vm246, %v259, %v263
    %v275 = vmax.f32 %v226, %v249
    %v276 = vmax.f32 %v227, %v252
    %v277 = vmax.f32 %v228, %v254
    %v278 = vmax.f32 %v229, %v256
    %v279 = vmax.f32 %v230, %v258
    %v280 = vmax.f32 %v231, %v260
    %v281 = vmax.f32 %v232, %v262
    %v282 = vmax.f32 %v233, %v264
    %v283 = vmax.f32 %v234, %v261
    %v284 = vmax.f32 %v235, %v263
    %295 = vrot.lane.b32.xlu0 %v275, 127
    %v296 = vpop.permute.xlu0 %295
    %297 = vrot.lane.b32.xlu0 %v276, 127
    %v298 = vpop.permute.xlu0 %297
    %299 = vrot.lane.b32.xlu0 %v277, 127
    %v300 = vpop.permute.xlu0 %299
    %301 = vrot.lane.b32.xlu0 %v278, 127
    %v302 = vpop.permute.xlu0 %301
    %303 = vrot.lane.b32.xlu0 %v279, 127
    %v304 = vpop.permute.xlu0 %303
    %305 = vrot.lane.b32.xlu0 %v280, 127
    %v306 = vpop.permute.xlu0 %305
    %307 = vrot.lane.b32.xlu0 %v281, 127
    %v308 = vpop.permute.xlu0 %307
    %309 = vrot.lane.b32.xlu0 %v282, 127
    %v310 = vpop.permute.xlu0 %309
    %311 = vrot.lane.b32.xlu0 %v283, 127
    %v312 = vpop.permute.xlu0 %311
    %313 = vrot.lane.b32.xlu0 %v284, 127
    %v314 = vpop.permute.xlu0 %313
    %vm315 = vcmask 1039360
    %v316 = vsel %vm315, %v296, %v298
    %v317 = vsel %vm315, %v300, %v302
    %v318 = vsel %vm315, %v304, %v306
    %v319 = vsel %vm315, %v308, %v310
    %v320 = vsel %vm315, %v312, %v314
    %v331 = vmax.f32 %v275, %v316
    %v332 = vmax.f32 %v276, %v298
    %v333 = vmax.f32 %v277, %v317
    %v334 = vmax.f32 %v278, %v302
    %v335 = vmax.f32 %v279, %v318
    %v336 = vmax.f32 %v280, %v306
    %v337 = vmax.f32 %v281, %v319
    %v338 = vmax.f32 %v282, %v310
    %v339 = vmax.f32 %v283, %v320
    %v340 = vmax.f32 %v284, %v314
    %v341 = vld [vmem:[%s3] sm:$0xff]
    %v342 = vld [vmem:[%s3 + $0x8] sm:$0xff]
    %v343 = vld [vmem:[%s3 + $0x10] sm:$0xff]
    %vm344 = vcmask 285696
    %v346 = vsel %vm344, %v341, 0
    %v349 = vsel %vm344, %v342, 0
    %v352 = vsel %vm344, %v343, 0
    %vm354 = vcmask 1042432
    %v356 = vsel %vm354, %v339, 0
    %v359 = vsel %vm354, %v340, 0
    %361 = vmatprep.subr.mxu0 %v332
    %362 = vmatpush1.msra.mxu0 %v331
    %363 = vmatprep.subr.mxu0 %v334
    %364 = vmatpush1.msra.mxu0 %v333
    %365 = vmatprep.subr.mxu0 %v336
    %366 = vmatpush1.msra.mxu0 %v335
    %367 = vmatprep.subr.mxu0 %v338
    %368 = vmatpush1.msra.mxu0 %v337
    %369 = vmatprep.subr.mxu0 %v359
    %370 = vmatpush1.msra.mxu0 %v356
    %371 = vmatprep.subr.mxu0 0.0
    %372 = vmatpush1.msra.mxu0 0.0
    %373 = vmatprep.subr.mxu0 0.0
    %374 = vmatpush1.msra.mxu0 0.0
    %375 = vmatprep.subr.mxu0 0.0
    %376 = vmatpush1.msra.mxu0 0.0
    %377 = vmatprep.subr.mxu0 0.0
    %378 = vmatpush1.msra.mxu0 0.0
    %379 = vmatprep.subr.mxu0 0.0
    %380 = vmatpush1.msra.mxu0 0.0
    %381 = vmatprep.subr.mxu0 0.0
    %382 = vmatpush1.msra.mxu0 0.0
    %383 = vmatprep.subr.mxu0 0.0
    %384 = vmatpush1.msra.mxu0 0.0
    %385 = vmatprep.subr.mxu0 0.0
    %386 = vmatpush1.msra.mxu0 0.0
    %387 = vmatprep.subr.mxu0 0.0
    %388 = vmatpush1.msra.mxu0 0.0
    %389 = vmatprep.subr.mxu0 0.0
    %390 = vmatpush1.msra.mxu0 0.0
    %391 = vmatprep.subr.mxu0 0.0
    %392 = vmatpush1.msra.mxu0 0.0
    %393 = vmatprep.subr.mxu0 0.0
    %394 = vmatpush1.msra.mxu0 0.0
    %395 = vmatprep.subr.mxu0 0.0
    %396 = vmatpush1.msra.mxu0 0.0
    %397 = vmatprep.subr.mxu0 0.0
    %398 = vmatpush1.msra.mxu0 0.0
    %399 = vmatprep.subr.mxu0 0.0
    %400 = vmatpush1.msra.mxu0 0.0
    %401 = vmatprep.subr.mxu0 0.0
    %402 = vmatpush1.msra.mxu0 0.0
    %403 = vmatprep.subr.mxu0 0.0
    %404 = vmatpush1.msra.mxu0 0.0
    %405 = vmatprep.subr.mxu0 0.0
    %406 = vmatpush1.msra.mxu0 0.0
    %407 = vmatprep.subr.mxu0 0.0
    %408 = vmatpush1.msra.mxu0 0.0
    %409 = vmatprep.subr.mxu0 0.0
    %410 = vmatpush1.msra.mxu0 0.0
    %411 = vmatprep.subr.mxu0 0.0
    %412 = vmatpush1.msra.mxu0 0.0
    %413 = vmatprep.subr.mxu0 0.0
    %414 = vmatpush1.msra.mxu0 0.0
    %415 = vmatprep.subr.mxu0 0.0
    %416 = vmatpush1.msra.mxu0 0.0
    %417 = vmatprep.subr.mxu0 0.0
    %418 = vmatpush1.msra.mxu0 0.0
    %419 = vmatprep.subr.mxu0 0.0
    %420 = vmatpush1.msra.mxu0 0.0
    %421 = vmatprep.subr.mxu0 0.0
    %422 = vmatpush1.msra.mxu0 0.0
    %423 = vmatprep.subr.mxu0 0.0
    %424 = vmatpush1.msra.mxu0 0.0
    %425 = vmatprep.mubr.f32.mxu0 0.0
    %426 = vmatmul.mubr.f32.gmra.mrb[0].mxu0 %v346
    %v427 = vpop.f32.mrb[0].mxu0
    %v428 = vadd.f32 0.0, %v427
    %v429 = vpop.f32.mrb[0].mxu0
    %v430 = vadd.f32 0.0, %v429
    %431 = vmatprep.mubr.f32.mxu0 0.0
    %432 = vmatmul.mubr.f32.gmra.mrb[0].mxu0 %v349
    %v433 = vpop.f32.mrb[0].mxu0
    %v434 = vadd.f32 0.0, %v433
    %v435 = vpop.f32.mrb[0].mxu0
    %v436 = vadd.f32 0.0, %v435
    %437 = vmatprep.mubr.f32.mxu0 0.0
    %438 = vmatmul.mubr.f32.gmra.mrb[0].mxu0 %v352
    %v439 = vpop.f32.mrb[0].mxu0
    %v440 = vadd.f32 0.0, %v439
    %v441 = vpop.f32.mrb[0].mxu0
    %v442 = vadd.f32 0.0, %v441
    %443 = vdwg.mxu0
    %v444 = vld [vmem:[%s4] sm:$0xff]
    %v445 = vld [vmem:[%s4 + $0x8] sm:$0xff]
    %v446 = vld [vmem:[%s4 + $0x10] sm:$0xff]
    %v447 = vld [vmem:[%s4 + $0x18] sm:$0xff]
    %v448 = vld [vmem:[%s4 + $0x20] sm:$0xff]
    %v449 = vld [vmem:[%s4 + $0x28] sm:$0xff]
    %v450 = vld [vmem:[%s4 + $0x30] sm:$0xff]
    %v451 = vld [vmem:[%s4 + $0x38] sm:$0xff]
    %v452 = vld [vmem:[%s4 + $0x40] sm:$0xff]
    %v453 = vld [vmem:[%s4 + $0x48] sm:$0xff]
    %v454 = vld [vmem:[%s4 + $0x50] sm:$0xff]
    %v455 = vld [vmem:[%s4 + $0x58] sm:$0xff]
    %v456 = vld [vmem:[%s4 + $0x60] sm:$0xff]
    %v457 = vld [vmem:[%s4 + $0x68] sm:$0xff]
    %v458 = vld [vmem:[%s4 + $0x70] sm:$0xff]
    %v459 = vld [vmem:[%s4 + $0x78] sm:$0xff]
    %v460 = vld [vmem:[%s4 + $0x80] sm:$0xff]
    %v461 = vld [vmem:[%s4 + $0x88] sm:$0x7f]
    %vm462 = vcmask 121856
    %v464 = vsel %vm462, %v430, 0
    %v467 = vsel %vm462, %v436, 0
    %v470 = vsel %vm462, %v442, 0
    %v473 = vsel %vm246, %v461, 0
    %475 = vmatprep.subr.mxu0 0.0
    %476 = vmatpush1.msra.mxu0 %v444
    %477 = vmatprep.subr.mxu0 0.0
    %478 = vmatpush1.msra.mxu0 %v445
    %479 = vmatprep.subr.mxu0 0.0
    %480 = vmatpush1.msra.mxu0 %v446
    %481 = vmatprep.subr.mxu0 0.0
    %482 = vmatpush1.msra.mxu0 %v447
    %483 = vmatprep.subr.mxu0 0.0
    %484 = vmatpush1.msra.mxu0 %v448
    %485 = vmatprep.subr.mxu0 0.0
    %486 = vmatpush1.msra.mxu0 %v449
    %487 = vmatprep.subr.mxu0 0.0
    %488 = vmatpush1.msra.mxu0 %v450
    %489 = vmatprep.subr.mxu0 0.0
    %490 = vmatpush1.msra.mxu0 %v451
    %491 = vmatprep.subr.mxu0 0.0
    %492 = vmatpush1.msra.mxu0 %v452
    %493 = vmatprep.subr.mxu0 0.0
    %494 = vmatpush1.msra.mxu0 %v453
    %495 = vmatprep.subr.mxu0 0.0
    %496 = vmatpush1.msra.mxu0 %v454
    %497 = vmatprep.subr.mxu0 0.0
    %498 = vmatpush1.msra.mxu0 %v455
    %499 = vmatprep.subr.mxu0 0.0
    %500 = vmatpush1.msra.mxu0 %v456
    %501 = vmatprep.subr.mxu0 0.0
    %502 = vmatpush1.msra.mxu0 %v457
    %503 = vmatprep.subr.mxu0 0.0
    %504 = vmatpush1.msra.mxu0 %v458
    %505 = vmatprep.subr.mxu0 0.0
    %506 = vmatpush1.msra.mxu0 %v459
    %507 = vmatprep.subr.mxu0 0.0
    %508 = vmatpush1.msra.mxu0 %v460
    %509 = vmatprep.subr.mxu0 0.0
    %510 = vmatpush1.msra.mxu0 %v473
    %511 = vmatprep.subr.mxu0 0.0
    %512 = vmatpush1.msra.mxu0 0.0
    %513 = vmatprep.subr.mxu0 0.0
    %514 = vmatpush1.msra.mxu0 0.0
    %515 = vmatprep.subr.mxu0 0.0
    %516 = vmatpush1.msra.mxu0 0.0
    %517 = vmatprep.subr.mxu0 0.0
    %518 = vmatpush1.msra.mxu0 0.0
    %519 = vmatprep.subr.mxu0 0.0
    %520 = vmatpush1.msra.mxu0 0.0
    %521 = vmatprep.subr.mxu0 0.0
    %522 = vmatpush1.msra.mxu0 0.0
    %523 = vmatprep.subr.mxu0 0.0
    %524 = vmatpush1.msra.mxu0 0.0
    %525 = vmatprep.subr.mxu0 0.0
    %526 = vmatpush1.msra.mxu0 0.0
    %527 = vmatprep.subr.mxu0 0.0
    %528 = vmatpush1.msra.mxu0 0.0
    %529 = vmatprep.subr.mxu0 0.0
    %530 = vmatpush1.msra.mxu0 0.0
    %531 = vmatprep.subr.mxu0 0.0
    %532 = vmatpush1.msra.mxu0 0.0
    %533 = vmatprep.subr.mxu0 0.0
    %534 = vmatpush1.msra.mxu0 0.0
    %535 = vmatprep.subr.mxu0 0.0
    %536 = vmatpush1.msra.mxu0 0.0
    %537 = vmatprep.subr.mxu0 0.0
    %538 = vmatpush1.msra.mxu0 0.0
    %539 = vmatprep.mubr.f32.mxu0 %v464
    %540 = vmatmul.mubr.f32.gmra.mrb[0].mxu0 %v428
    %v541 = vpop.f32.mrb[0].mxu0
    %v542 = vadd.f32 0.0, %v541
    %v543 = vpop.f32.mrb[0].mxu0
    %544 = vmatprep.mubr.f32.mxu0 %v467
    %545 = vmatmul.mubr.f32.gmra.mrb[0].mxu0 %v434
    %v546 = vpop.f32.mrb[0].mxu0
    %v547 = vadd.f32 0.0, %v546
    %v548 = vpop.f32.mrb[0].mxu0
    %549 = vmatprep.mubr.f32.mxu0 %v470
    %550 = vmatmul.mubr.f32.gmra.mrb[0].mxu0 %v440
    %v551 = vpop.f32.mrb[0].mxu0
    %v552 = vadd.f32 0.0, %v551
    %v553 = vpop.f32.mrb[0].mxu0
    %554 = vdwg.mxu0
    %vm555 = vcmask 779264
    %556 = vst.msk [vmem:[#allocation2] sm:$0x3] %vm555, %v542
    %v559 = vunpack.c.l.s4 1983009808
    %v560 = vunpack.c.0.s8 %v559
    %v561 = vlaneseq
    %v562 = vshrl.u32 %v561, 7
    %v563 = vsub.s32 %v560, %v562
    %v564 = vrot.slane %v542, %v563
    %v565 = vcombine.high %v564, %v564
    %566 = vrot.lane.b32.xlu0 %v565, 96
    %v567 = vpop.permute.xlu0 %566
    %v568 = vrot.slane %v567, 6
    %vm569 = vcmask 785408
    %v570 = vsel %vm569, %v568, %v567
    %vm572 = vcmask 1042176
    %vm573 = vcmask 519170
    %vm574 = vmor %vm573, %vm572
    %575 = vst.msk [vmem:[#allocation2] sm:$0xf] %vm574, %v570
    %v576 = vcombine.high %v542, %v542
    %v578 = vunpack.c.l.s4 1983009808
    %v579 = vunpack.c.0.s8 %v578
    %v580 = vlaneseq
    %v581 = vshrl.u32 %v580, 7
    %v582 = vsub.s32 %v579, %v581
    %v583 = vrot.slane %v576, %v582
    %584 = vrot.lane.b32.xlu0 %v583, 64
    %v585 = vpop.permute.xlu0 %584
    %v586 = vrot.slane %v585, 6
    %vm587 = vcmask 523264
    %v588 = vsel %vm587, %v586, %v585
    %vm590 = vcmask 1041920
    %vm591 = vcmask 257026
    %vm592 = vmor %vm591, %vm590
    %593 = vst.msk [vmem:[#allocation2 + $0x2] sm:$0xf] %vm592, %v588
    %v594 = vcombine.high %v583, %v583
    %595 = vrot.lane.b32.xlu0 %v594, 32
    %v596 = vpop.permute.xlu0 %595
    %vm598 = vcmask 1041664
    %599 = vst.msk [vmem:[#allocation2 + $0x4] sm:$0x3] %vm598, %v596
    %600 = vst.msk [vmem:[#allocation2 + $0x6] sm:$0x3] %vm555, %v547
    %v603 = vunpack.c.l.s4 1983009808
    %v604 = vunpack.c.0.s8 %v603
    %v605 = vlaneseq
    %v606 = vshrl.u32 %v605, 7
    %v607 = vsub.s32 %v604, %v606
    %v608 = vrot.slane %v547, %v607
    %v609 = vcombine.high %v608, %v608
    %610 = vrot.lane.b32.xlu0 %v609, 96
    %v611 = vpop.permute.xlu0 %610
    %v612 = vrot.slane %v611, 6
    %v613 = vsel %vm569, %v612, %v611
    %615 = vst.msk [vmem:[#allocation2 + $0x6] sm:$0xf] %vm574, %v613
    %v616 = vcombine.high %v547, %v547
    %v618 = vunpack.c.l.s4 1983009808
    %v619 = vunpack.c.0.s8 %v618
    %v620 = vlaneseq
    %v621 = vshrl.u32 %v620, 7
    %v622 = vsub.s32 %v619, %v621
    %v623 = vrot.slane %v616, %v622
    %624 = vrot.lane.b32.xlu0 %v623, 64
    %v625 = vpop.permute.xlu0 %624
    %v626 = vrot.slane %v625, 6
    %v627 = vsel %vm587, %v626, %v625
    %629 = vst.msk [vmem:[#allocation2 + $0x8] sm:$0xf] %vm592, %v627
    %v630 = vcombine.high %v623, %v623
    %631 = vrot.lane.b32.xlu0 %v630, 32
    %v632 = vpop.permute.xlu0 %631
    %634 = vst.msk [vmem:[#allocation2 + $0xa] sm:$0x3] %vm598, %v632
    %635 = vst.msk [vmem:[#allocation2 + $0xc] sm:$0x3] %vm555, %v552
    %v638 = vunpack.c.l.s4 1983009808
    %v639 = vunpack.c.0.s8 %v638
    %v640 = vlaneseq
    %v641 = vshrl.u32 %v640, 7
    %v642 = vsub.s32 %v639, %v641
    %v643 = vrot.slane %v552, %v642
    %v644 = vcombine.high %v643, %v643
    %645 = vrot.lane.b32.xlu0 %v644, 96
    %v646 = vpop.permute.xlu0 %645
    %v647 = vrot.slane %v646, 6
    %v648 = vsel %vm569, %v647, %v646
    %650 = vst.msk [vmem:[#allocation2 + $0xc] sm:$0xf] %vm574, %v648
    %v651 = vcombine.high %v552, %v552
    %v653 = vunpack.c.l.s4 1983009808
    %v654 = vunpack.c.0.s8 %v653
    %v655 = vlaneseq
    %v656 = vshrl.u32 %v655, 7
    %v657 = vsub.s32 %v654, %v656
    %v658 = vrot.slane %v651, %v657
    %659 = vrot.lane.b32.xlu0 %v658, 64
    %v660 = vpop.permute.xlu0 %659
    %v661 = vrot.slane %v660, 6
    %v662 = vsel %vm587, %v661, %v660
    %664 = vst.msk [vmem:[#allocation2 + $0xe] sm:$0xf] %vm592, %v662
    %v665 = vcombine.high %v658, %v658
    %666 = vrot.lane.b32.xlu0 %v665, 32
    %v667 = vpop.permute.xlu0 %666
    %669 = vst.msk [vmem:[#allocation2 + $0x10] sm:$0x3] %vm598, %v667
    %v670 = vld [vmem:[#allocation2] sm:$0xff]
    %v671 = vld [vmem:[#allocation2 + $0x8] sm:$0xff]
    %v672 = vld [vmem:[#allocation2 + $0x10] sm:$0x3]
    %v673 = vld [vmem:[%s5] sm:$0xff]
    %v674 = vld [vmem:[%s5 + $0x8] sm:$0xff]
    %v675 = vld [vmem:[%s5 + $0x10] sm:$0xff]
    %v676 = vld [vmem:[%s5 + $0x18] sm:$0xff]
    %v677 = vld [vmem:[%s5 + $0x20] sm:$0xff]
    %v678 = vld [vmem:[%s5 + $0x28] sm:$0xff]
    %v679 = vld [vmem:[%s5 + $0x30] sm:$0xff]
    %v680 = vld [vmem:[%s5 + $0x38] sm:$0xff]
    %v681 = vld [vmem:[%s5 + $0x40] sm:$0xff]
    %v682 = vld [vmem:[%s5 + $0x48] sm:$0xff]
    %v683 = vld [vmem:[%s5 + $0x50] sm:$0xff]
    %v684 = vld [vmem:[%s5 + $0x58] sm:$0xff]
    %v685 = vld [vmem:[%s5 + $0x60] sm:$0xff]
    %v686 = vld [vmem:[%s5 + $0x68] sm:$0xff]
    %v687 = vld [vmem:[%s5 + $0x70] sm:$0xff]
    %v688 = vld [vmem:[%s5 + $0x78] sm:$0xff]
    %v689 = vld [vmem:[%s5 + $0x80] sm:$0xff]
    %v690 = vld [vmem:[%s5 + $0x88] sm:$0xff]
    %v691 = vld [vmem:[%s5 + $0x90] sm:$0xff]
    %v692 = vld [vmem:[%s5 + $0x98] sm:$0xff]
    %v693 = vld [vmem:[%s5 + $0xa0] sm:$0xff]
    %v694 = vld [vmem:[%s5 + $0xa8] sm:$0xff]
    %v695 = vld [vmem:[%s5 + $0xb0] sm:$0xff]
    %v696 = vld [vmem:[%s5 + $0xb8] sm:$0xff]
    %v697 = vld [vmem:[%s5 + $0xc0] sm:$0xff]
    %v698 = vld [vmem:[%s5 + $0xc8] sm:$0xff]
    %v699 = vld [vmem:[%s5 + $0xd0] sm:$0xff]
    %v700 = vld [vmem:[%s5 + $0xd8] sm:$0xff]
    %v701 = vld [vmem:[%s5 + $0xe0] sm:$0xff]
    %v702 = vld [vmem:[%s5 + $0xe8] sm:$0xff]
    %v703 = vld [vmem:[%s5 + $0xf0] sm:$0xff]
    %v704 = vld [vmem:[%s5 + $0xf8] sm:$0xff]
    %v705 = vld [vmem:[%s5 + $0x100] sm:$0xff]
    %v706 = vld [vmem:[%s5 + $0x108] sm:$0xff]
    %v707 = vld [vmem:[%s5 + $0x110] sm:$0xff]
    %v708 = vld [vmem:[%s5 + $0x118] sm:$0xff]
    %v709 = vld [vmem:[%s5 + $0x120] sm:$0xff]
    %v710 = vld [vmem:[%s5 + $0x128] sm:$0xff]
    %v711 = vld [vmem:[%s5 + $0x130] sm:$0xff]
    %v712 = vld [vmem:[%s5 + $0x138] sm:$0xff]
    %v713 = vld [vmem:[%s5 + $0x140] sm:$0xff]
    %v714 = vld [vmem:[%s5 + $0x148] sm:$0xff]
    %v715 = vld [vmem:[%s5 + $0x150] sm:$0xff]
    %v716 = vld [vmem:[%s5 + $0x158] sm:$0xff]
    %v717 = vld [vmem:[%s5 + $0x160] sm:$0xff]
    %v718 = vld [vmem:[%s5 + $0x168] sm:$0xff]
    %v719 = vld [vmem:[%s5 + $0x170] sm:$0xff]
    %v720 = vld [vmem:[%s5 + $0x178] sm:$0xff]
    %v721 = vld [vmem:[%s5 + $0x180] sm:$0xff]
    %v722 = vld [vmem:[%s5 + $0x188] sm:$0xff]
    %v723 = vld [vmem:[%s5 + $0x190] sm:$0xff]
    %v724 = vld [vmem:[%s5 + $0x198] sm:$0xff]
    %v725 = vld [vmem:[%s5 + $0x1a0] sm:$0xff]
    %v726 = vld [vmem:[%s5 + $0x1a8] sm:$0xff]
    %v727 = vld [vmem:[%s5 + $0x1b0] sm:$0xff]
    %v728 = vld [vmem:[%s5 + $0x1b8] sm:$0xff]
    %v729 = vld [vmem:[%s5 + $0x1c0] sm:$0xff]
    %v730 = vld [vmem:[%s5 + $0x1c8] sm:$0xff]
    %v731 = vld [vmem:[%s5 + $0x1d0] sm:$0xff]
    %v732 = vld [vmem:[%s5 + $0x1d8] sm:$0xff]
    %v733 = vld [vmem:[%s5 + $0x1e0] sm:$0xff]
    %v734 = vld [vmem:[%s5 + $0x1e8] sm:$0xff]
    %v735 = vld [vmem:[%s5 + $0x1f0] sm:$0xff]
    %v736 = vld [vmem:[%s5 + $0x1f8] sm:$0xff]
    %v737 = vld [vmem:[%s5 + $0x200] sm:$0xff]
    %v738 = vld [vmem:[%s5 + $0x208] sm:$0xff]
    %v739 = vld [vmem:[%s5 + $0x210] sm:$0xff]
    %v740 = vld [vmem:[%s5 + $0x218] sm:$0xff]
    %v741 = vld [vmem:[%s5 + $0x220] sm:$0xff]
    %v742 = vld [vmem:[%s5 + $0x228] sm:$0xff]
    %v743 = vld [vmem:[%s5 + $0x230] sm:$0xff]
    %v744 = vld [vmem:[%s5 + $0x238] sm:$0xff]
    %v745 = vld [vmem:[%s5 + $0x240] sm:$0xff]
    %v746 = vld [vmem:[%s5 + $0x248] sm:$0xff]
    %v747 = vld [vmem:[%s5 + $0x250] sm:$0xff]
    %v748 = vld [vmem:[%s5 + $0x258] sm:$0xff]
    %v749 = vld [vmem:[%s5 + $0x260] sm:$0xff]
    %v750 = vld [vmem:[%s5 + $0x268] sm:$0xff]
    %v751 = vld [vmem:[%s5 + $0x270] sm:$0xff]
    %v752 = vld [vmem:[%s5 + $0x278] sm:$0xff]
    %v753 = vld [vmem:[%s5 + $0x280] sm:$0xff]
    %v754 = vld [vmem:[%s5 + $0x288] sm:$0xff]
    %v755 = vld [vmem:[%s5 + $0x290] sm:$0xff]
    %v756 = vld [vmem:[%s5 + $0x298] sm:$0xff]
    %v757 = vld [vmem:[%s5 + $0x2a0] sm:$0xff]
    %v758 = vld [vmem:[%s5 + $0x2a8] sm:$0xff]
    %v759 = vld [vmem:[%s5 + $0x2b0] sm:$0xff]
    %v760 = vld [vmem:[%s5 + $0x2b8] sm:$0xff]
    %v761 = vld [vmem:[%s5 + $0x2c0] sm:$0xff]
    %v762 = vld [vmem:[%s5 + $0x2c8] sm:$0xff]
    %v763 = vld [vmem:[%s5 + $0x2d0] sm:$0xff]
    %v764 = vld [vmem:[%s5 + $0x2d8] sm:$0xff]
    %v765 = vld [vmem:[%s5 + $0x2e0] sm:$0xff]
    %v766 = vld [vmem:[%s5 + $0x2e8] sm:$0xff]
    %v767 = vld [vmem:[%s5 + $0x2f0] sm:$0xff]
    %v768 = vld [vmem:[%s5 + $0x2f8] sm:$0xff]
    %v769 = vld [vmem:[%s5 + $0x300] sm:$0xff]
    %v770 = vld [vmem:[%s5 + $0x308] sm:$0xff]
    %v771 = vld [vmem:[%s5 + $0x310] sm:$0xff]
    %v772 = vld [vmem:[%s5 + $0x318] sm:$0xff]
    %v773 = vld [vmem:[%s5 + $0x320] sm:$0xff]
    %v774 = vld [vmem:[%s5 + $0x328] sm:$0xff]
    %v775 = vld [vmem:[%s5 + $0x330] sm:$0xff]
    %v776 = vld [vmem:[%s5 + $0x338] sm:$0xff]
    %v777 = vld [vmem:[%s5 + $0x340] sm:$0xff]
    %v778 = vld [vmem:[%s5 + $0x348] sm:$0xff]
    %v779 = vld [vmem:[%s5 + $0x350] sm:$0xff]
    %v780 = vld [vmem:[%s5 + $0x358] sm:$0xff]
    %v781 = vld [vmem:[%s5 + $0x360] sm:$0xff]
    %v782 = vld [vmem:[%s5 + $0x368] sm:$0xff]
    %v783 = vld [vmem:[%s5 + $0x370] sm:$0xff]
    %v784 = vld [vmem:[%s5 + $0x378] sm:$0xff]
    %v785 = vld [vmem:[%s5 + $0x380] sm:$0xff]
    %v786 = vld [vmem:[%s5 + $0x388] sm:$0xff]
    %v787 = vld [vmem:[%s5 + $0x390] sm:$0xff]
    %v788 = vld [vmem:[%s5 + $0x398] sm:$0xff]
    %v789 = vld [vmem:[%s5 + $0x3a0] sm:$0xff]
    %v790 = vld [vmem:[%s5 + $0x3a8] sm:$0xff]
    %v791 = vld [vmem:[%s5 + $0x3b0] sm:$0xff]
    %v792 = vld [vmem:[%s5 + $0x3b8] sm:$0xff]
    %v793 = vld [vmem:[%s5 + $0x3c0] sm:$0xff]
    %v794 = vld [vmem:[%s5 + $0x3c8] sm:$0xff]
    %v795 = vld [vmem:[%s5 + $0x3d0] sm:$0xff]
    %v796 = vld [vmem:[%s5 + $0x3d8] sm:$0xff]
    %v797 = vld [vmem:[%s5 + $0x3e0] sm:$0xff]
    %v798 = vld [vmem:[%s5 + $0x3e8] sm:$0xff]
    %v799 = vld [vmem:[%s5 + $0x3f0] sm:$0xff]
    %v800 = vld [vmem:[%s5 + $0x3f8] sm:$0xff]
    %v801 = vld [vmem:[%s5 + $0x400] sm:$0xff]
    %v802 = vld [vmem:[%s5 + $0x408] sm:$0xff]
    %v803 = vld [vmem:[%s5 + $0x410] sm:$0xff]
    %v804 = vld [vmem:[%s5 + $0x418] sm:$0xff]
    %v805 = vld [vmem:[%s5 + $0x420] sm:$0xff]
    %v806 = vld [vmem:[%s5 + $0x428] sm:$0xff]
    %v807 = vld [vmem:[%s5 + $0x430] sm:$0xff]
    %v808 = vld [vmem:[%s5 + $0x438] sm:$0xff]
    %v809 = vld [vmem:[%s5 + $0x440] sm:$0xff]
    %v810 = vld [vmem:[%s5 + $0x448] sm:$0xff]
    %v811 = vld [vmem:[%s5 + $0x450] sm:$0xff]
    %v812 = vld [vmem:[%s5 + $0x458] sm:$0xff]
    %v813 = vld [vmem:[%s5 + $0x460] sm:$0xff]
    %v814 = vld [vmem:[%s5 + $0x468] sm:$0xff]
    %v815 = vld [vmem:[%s5 + $0x470] sm:$0xff]
    %v816 = vld [vmem:[%s5 + $0x478] sm:$0xff]
    %v817 = vld [vmem:[%s6] sm:$0x1]
    %v819 = vlaneseq
    %v820 = vshrl.u32 %v819, 7
    %v821 = vsub.s32 0, %v820
    %v822 = vrot.slane %v817, %v821
    %v827 = vcombine.high %v670, %v670
    %v829 = vunpack.c.l.s4 1983009808
    %v830 = vunpack.c.0.s8 %v829
    %v831 = vlaneseq
    %v832 = vshrl.u32 %v831, 7
    %v833 = vsub.s32 %v830, %v832
    %v834 = vrot.slane %v670, %v833
    %v836 = vunpack.c.l.s4 1983009808
    %v837 = vunpack.c.0.s8 %v836
    %v838 = vlaneseq
    %v839 = vshrl.u32 %v838, 7
    %v840 = vsub.s32 %v837, %v839
    %v841 = vrot.slane %v827, %v840
    %v842 = vcombine.high %v834, %v834
    %v843 = vcombine.high %v841, %v841
    %v844 = vcombine.high %v671, %v671
    %v846 = vunpack.c.l.s4 1983009808
    %v847 = vunpack.c.0.s8 %v846
    %v848 = vlaneseq
    %v849 = vshrl.u32 %v848, 7
    %v850 = vsub.s32 %v847, %v849
    %v851 = vrot.slane %v671, %v850
    %v853 = vunpack.c.l.s4 1983009808
    %v854 = vunpack.c.0.s8 %v853
    %v855 = vlaneseq
    %v856 = vshrl.u32 %v855, 7
    %v857 = vsub.s32 %v854, %v856
    %v858 = vrot.slane %v844, %v857
    %v859 = vcombine.high %v851, %v851
    %v860 = vcombine.high %v858, %v858
    %v862 = vunpack.c.l.s4 1983009808
    %v863 = vunpack.c.0.s8 %v862
    %v864 = vlaneseq
    %v865 = vshrl.u32 %v864, 7
    %v866 = vsub.s32 %v863, %v865
    %v867 = vrot.slane %v672, %v866
    %877 = vmatprep.subr.mxu0 0.0
    %878 = vmatpush1.msra.mxu0 %v673
    %879 = vmatprep.subr.mxu0 0.0
    %880 = vmatpush1.msra.mxu0 %v674
    %881 = vmatprep.subr.mxu0 0.0
    %882 = vmatpush1.msra.mxu0 %v675
    %883 = vmatprep.subr.mxu0 0.0
    %884 = vmatpush1.msra.mxu0 %v676
    %885 = vmatprep.subr.mxu0 0.0
    %886 = vmatpush1.msra.mxu0 %v677
    %887 = vmatprep.subr.mxu0 0.0
    %888 = vmatpush1.msra.mxu0 %v678
    %889 = vmatprep.subr.mxu0 0.0
    %890 = vmatpush1.msra.mxu0 %v679
    %891 = vmatprep.subr.mxu0 0.0
    %892 = vmatpush1.msra.mxu0 %v680
    %893 = vmatprep.subr.mxu0 0.0
    %894 = vmatpush1.msra.mxu0 %v681
    %895 = vmatprep.subr.mxu0 0.0
    %896 = vmatpush1.msra.mxu0 %v682
    %897 = vmatprep.subr.mxu0 0.0
    %898 = vmatpush1.msra.mxu0 %v683
    %899 = vmatprep.subr.mxu0 0.0
    %900 = vmatpush1.msra.mxu0 %v684
    %901 = vmatprep.subr.mxu0 0.0
    %902 = vmatpush1.msra.mxu0 %v685
    %903 = vmatprep.subr.mxu0 0.0
    %904 = vmatpush1.msra.mxu0 %v686
    %905 = vmatprep.subr.mxu0 0.0
    %906 = vmatpush1.msra.mxu0 %v687
    %907 = vmatprep.subr.mxu0 0.0
    %908 = vmatpush1.msra.mxu0 %v688
    %909 = vmatprep.subr.mxu0 0.0
    %910 = vmatpush1.msra.mxu0 %v689
    %911 = vmatprep.subr.mxu0 0.0
    %912 = vmatpush1.msra.mxu0 %v690
    %913 = vmatprep.subr.mxu0 0.0
    %914 = vmatpush1.msra.mxu0 %v691
    %915 = vmatprep.subr.mxu0 0.0
    %916 = vmatpush1.msra.mxu0 %v692
    %917 = vmatprep.subr.mxu0 0.0
    %918 = vmatpush1.msra.mxu0 %v693
    %919 = vmatprep.subr.mxu0 0.0
    %920 = vmatpush1.msra.mxu0 %v694
    %921 = vmatprep.subr.mxu0 0.0
    %922 = vmatpush1.msra.mxu0 %v695
    %923 = vmatprep.subr.mxu0 0.0
    %924 = vmatpush1.msra.mxu0 %v696
    %925 = vmatprep.subr.mxu0 0.0
    %926 = vmatpush1.msra.mxu0 %v697
    %927 = vmatprep.subr.mxu0 0.0
    %928 = vmatpush1.msra.mxu0 %v698
    %929 = vmatprep.subr.mxu0 0.0
    %930 = vmatpush1.msra.mxu0 %v699
    %931 = vmatprep.subr.mxu0 0.0
    %932 = vmatpush1.msra.mxu0 %v700
    %933 = vmatprep.subr.mxu0 0.0
    %934 = vmatpush1.msra.mxu0 %v701
    %935 = vmatprep.subr.mxu0 0.0
    %936 = vmatpush1.msra.mxu0 %v702
    %937 = vmatprep.subr.mxu0 0.0
    %938 = vmatpush1.msra.mxu0 %v703
    %939 = vmatprep.subr.mxu0 0.0
    %940 = vmatpush1.msra.mxu0 %v704
    %941 = vmatprep.mubr.f32.mxu0 %v842
    %942 = vmatmul.mubr.f32.gmra.mrb[0].mxu0 %v834
    %v943 = vpop.f32.mrb[0].mxu0
    %v944 = vadd.f32 %v822, %v943
    %v945 = vpop.f32.mrb[0].mxu0
    %946 = vdwg.mxu0
    %947 = vmatprep.subr.mxu0 0.0
    %948 = vmatpush1.msra.mxu0 %v705
    %949 = vmatprep.subr.mxu0 0.0
    %950 = vmatpush1.msra.mxu0 %v706
    %951 = vmatprep.subr.mxu0 0.0
    %952 = vmatpush1.msra.mxu0 %v707
    %953 = vmatprep.subr.mxu0 0.0
    %954 = vmatpush1.msra.mxu0 %v708
    %955 = vmatprep.subr.mxu0 0.0
    %956 = vmatpush1.msra.mxu0 %v709
    %957 = vmatprep.subr.mxu0 0.0
    %958 = vmatpush1.msra.mxu0 %v710
    %959 = vmatprep.subr.mxu0 0.0
    %960 = vmatpush1.msra.mxu0 %v711
    %961 = vmatprep.subr.mxu0 0.0
    %962 = vmatpush1.msra.mxu0 %v712
    %963 = vmatprep.subr.mxu0 0.0
    %964 = vmatpush1.msra.mxu0 %v713
    %965 = vmatprep.subr.mxu0 0.0
    %966 = vmatpush1.msra.mxu0 %v714
    %967 = vmatprep.subr.mxu0 0.0
    %968 = vmatpush1.msra.mxu0 %v715
    %969 = vmatprep.subr.mxu0 0.0
    %970 = vmatpush1.msra.mxu0 %v716
    %971 = vmatprep.subr.mxu0 0.0
    %972 = vmatpush1.msra.mxu0 %v717
    %973 = vmatprep.subr.mxu0 0.0
    %974 = vmatpush1.msra.mxu0 %v718
    %975 = vmatprep.subr.mxu0 0.0
    %976 = vmatpush1.msra.mxu0 %v719
    %977 = vmatprep.subr.mxu0 0.0
    %978 = vmatpush1.msra.mxu0 %v720
    %979 = vmatprep.subr.mxu0 0.0
    %980 = vmatpush1.msra.mxu0 %v721
    %981 = vmatprep.subr.mxu0 0.0
    %982 = vmatpush1.msra.mxu0 %v722
    %983 = vmatprep.subr.mxu0 0.0
    %984 = vmatpush1.msra.mxu0 %v723
    %985 = vmatprep.subr.mxu0 0.0
    %986 = vmatpush1.msra.mxu0 %v724
    %987 = vmatprep.subr.mxu0 0.0
    %988 = vmatpush1.msra.mxu0 %v725
    %989 = vmatprep.subr.mxu0 0.0
    %990 = vmatpush1.msra.mxu0 %v726
    %991 = vmatprep.subr.mxu0 0.0
    %992 = vmatpush1.msra.mxu0 %v727
    %993 = vmatprep.subr.mxu0 0.0
    %994 = vmatpush1.msra.mxu0 %v728
    %995 = vmatprep.subr.mxu0 0.0
    %996 = vmatpush1.msra.mxu0 %v729
    %997 = vmatprep.subr.mxu0 0.0
    %998 = vmatpush1.msra.mxu0 %v730
    %999 = vmatprep.subr.mxu0 0.0
    %1000 = vmatpush1.msra.mxu0 %v731
    %1001 = vmatprep.subr.mxu0 0.0
    %1002 = vmatpush1.msra.mxu0 %v732
    %1003 = vmatprep.subr.mxu0 0.0
    %1004 = vmatpush1.msra.mxu0 %v733
    %1005 = vmatprep.subr.mxu0 0.0
    %1006 = vmatpush1.msra.mxu0 %v734
    %1007 = vmatprep.subr.mxu0 0.0
    %1008 = vmatpush1.msra.mxu0 %v735
    %1009 = vmatprep.subr.mxu0 0.0
    %1010 = vmatpush1.msra.mxu0 %v736
    %1011 = vmatprep.mubr.f32.mxu0 %v843
    %1012 = vmatmul.mubr.f32.gmra.mrb[0].mxu0 %v841
    %v1013 = vpop.f32.mrb[0].mxu0
    %v1014 = vadd.f32 %v944, %v1013
    %v1015 = vpop.f32.mrb[0].mxu0
    %1016 = vdwg.mxu0
    %1017 = vmatprep.subr.mxu0 0.0
    %1018 = vmatpush1.msra.mxu0 %v737
    %1019 = vmatprep.subr.mxu0 0.0
    %1020 = vmatpush1.msra.mxu0 %v738
    %1021 = vmatprep.subr.mxu0 0.0
    %1022 = vmatpush1.msra.mxu0 %v739
    %1023 = vmatprep.subr.mxu0 0.0
    %1024 = vmatpush1.msra.mxu0 %v740
    %1025 = vmatprep.subr.mxu0 0.0
    %1026 = vmatpush1.msra.mxu0 %v741
    %1027 = vmatprep.subr.mxu0 0.0
    %1028 = vmatpush1.msra.mxu0 %v742
    %1029 = vmatprep.subr.mxu0 0.0
    %1030 = vmatpush1.msra.mxu0 %v743
    %1031 = vmatprep.subr.mxu0 0.0
    %1032 = vmatpush1.msra.mxu0 %v744
    %1033 = vmatprep.subr.mxu0 0.0
    %1034 = vmatpush1.msra.mxu0 %v745
    %1035 = vmatprep.subr.mxu0 0.0
    %1036 = vmatpush1.msra.mxu0 %v746
    %1037 = vmatprep.subr.mxu0 0.0
    %1038 = vmatpush1.msra.mxu0 %v747
    %1039 = vmatprep.subr.mxu0 0.0
    %1040 = vmatpush1.msra.mxu0 %v748
    %1041 = vmatprep.subr.mxu0 0.0
    %1042 = vmatpush1.msra.mxu0 %v749
    %1043 = vmatprep.subr.mxu0 0.0
    %1044 = vmatpush1.msra.mxu0 %v750
    %1045 = vmatprep.subr.mxu0 0.0
    %1046 = vmatpush1.msra.mxu0 %v751
    %1047 = vmatprep.subr.mxu0 0.0
    %1048 = vmatpush1.msra.mxu0 %v752
    %1049 = vmatprep.subr.mxu0 0.0
    %1050 = vmatpush1.msra.mxu0 %v753
    %1051 = vmatprep.subr.mxu0 0.0
    %1052 = vmatpush1.msra.mxu0 %v754
    %1053 = vmatprep.subr.mxu0 0.0
    %1054 = vmatpush1.msra.mxu0 %v755
    %1055 = vmatprep.subr.mxu0 0.0
    %1056 = vmatpush1.msra.mxu0 %v756
    %1057 = vmatprep.subr.mxu0 0.0
    %1058 = vmatpush1.msra.mxu0 %v757
    %1059 = vmatprep.subr.mxu0 0.0
    %1060 = vmatpush1.msra.mxu0 %v758
    %1061 = vmatprep.subr.mxu0 0.0
    %1062 = vmatpush1.msra.mxu0 %v759
    %1063 = vmatprep.subr.mxu0 0.0
    %1064 = vmatpush1.msra.mxu0 %v760
    %1065 = vmatprep.subr.mxu0 0.0
    %1066 = vmatpush1.msra.mxu0 %v761
    %1067 = vmatprep.subr.mxu0 0.0
    %1068 = vmatpush1.msra.mxu0 %v762
    %1069 = vmatprep.subr.mxu0 0.0
    %1070 = vmatpush1.msra.mxu0 %v763
    %1071 = vmatprep.subr.mxu0 0.0
    %1072 = vmatpush1.msra.mxu0 %v764
    %1073 = vmatprep.subr.mxu0 0.0
    %1074 = vmatpush1.msra.mxu0 %v765
    %1075 = vmatprep.subr.mxu0 0.0
    %1076 = vmatpush1.msra.mxu0 %v766
    %1077 = vmatprep.subr.mxu0 0.0
    %1078 = vmatpush1.msra.mxu0 %v767
    %1079 = vmatprep.subr.mxu0 0.0
    %1080 = vmatpush1.msra.mxu0 %v768
    %1081 = vmatprep.mubr.f32.mxu0 %v859
    %1082 = vmatmul.mubr.f32.gmra.mrb[0].mxu0 %v851
    %v1083 = vpop.f32.mrb[0].mxu0
    %v1084 = vadd.f32 %v1014, %v1083
    %v1085 = vpop.f32.mrb[0].mxu0
    %1086 = vdwg.mxu0
    %1087 = vmatprep.subr.mxu0 0.0
    %1088 = vmatpush1.msra.mxu0 %v769
    %1089 = vmatprep.subr.mxu0 0.0
    %1090 = vmatpush1.msra.mxu0 %v770
    %1091 = vmatprep.subr.mxu0 0.0
    %1092 = vmatpush1.msra.mxu0 %v771
    %1093 = vmatprep.subr.mxu0 0.0
    %1094 = vmatpush1.msra.mxu0 %v772
    %1095 = vmatprep.subr.mxu0 0.0
    %1096 = vmatpush1.msra.mxu0 %v773
    %1097 = vmatprep.subr.mxu0 0.0
    %1098 = vmatpush1.msra.mxu0 %v774
    %1099 = vmatprep.subr.mxu0 0.0
    %1100 = vmatpush1.msra.mxu0 %v775
    %1101 = vmatprep.subr.mxu0 0.0
    %1102 = vmatpush1.msra.mxu0 %v776
    %1103 = vmatprep.subr.mxu0 0.0
    %1104 = vmatpush1.msra.mxu0 %v777
    %1105 = vmatprep.subr.mxu0 0.0
    %1106 = vmatpush1.msra.mxu0 %v778
    %1107 = vmatprep.subr.mxu0 0.0
    %1108 = vmatpush1.msra.mxu0 %v779
    %1109 = vmatprep.subr.mxu0 0.0
    %1110 = vmatpush1.msra.mxu0 %v780
    %1111 = vmatprep.subr.mxu0 0.0
    %1112 = vmatpush1.msra.mxu0 %v781
    %1113 = vmatprep.subr.mxu0 0.0
    %1114 = vmatpush1.msra.mxu0 %v782
    %1115 = vmatprep.subr.mxu0 0.0
    %1116 = vmatpush1.msra.mxu0 %v783
    %1117 = vmatprep.subr.mxu0 0.0
    %1118 = vmatpush1.msra.mxu0 %v784
    %1119 = vmatprep.subr.mxu0 0.0
    %1120 = vmatpush1.msra.mxu0 %v785
    %1121 = vmatprep.subr.mxu0 0.0
    %1122 = vmatpush1.msra.mxu0 %v786
    %1123 = vmatprep.subr.mxu0 0.0
    %1124 = vmatpush1.msra.mxu0 %v787
    %1125 = vmatprep.subr.mxu0 0.0
    %1126 = vmatpush1.msra.mxu0 %v788
    %1127 = vmatprep.subr.mxu0 0.0
    %1128 = vmatpush1.msra.mxu0 %v789
    %1129 = vmatprep.subr.mxu0 0.0
    %1130 = vmatpush1.msra.mxu0 %v790
    %1131 = vmatprep.subr.mxu0 0.0
    %1132 = vmatpush1.msra.mxu0 %v791
    %1133 = vmatprep.subr.mxu0 0.0
    %1134 = vmatpush1.msra.mxu0 %v792
    %1135 = vmatprep.subr.mxu0 0.0
    %1136 = vmatpush1.msra.mxu0 %v793
    %1137 = vmatprep.subr.mxu0 0.0
    %1138 = vmatpush1.msra.mxu0 %v794
    %1139 = vmatprep.subr.mxu0 0.0
    %1140 = vmatpush1.msra.mxu0 %v795
    %1141 = vmatprep.subr.mxu0 0.0
    %1142 = vmatpush1.msra.mxu0 %v796
    %1143 = vmatprep.subr.mxu0 0.0
    %1144 = vmatpush1.msra.mxu0 %v797
    %1145 = vmatprep.subr.mxu0 0.0
    %1146 = vmatpush1.msra.mxu0 %v798
    %1147 = vmatprep.subr.mxu0 0.0
    %1148 = vmatpush1.msra.mxu0 %v799
    %1149 = vmatprep.subr.mxu0 0.0
    %1150 = vmatpush1.msra.mxu0 %v800
    %1151 = vmatprep.mubr.f32.mxu0 %v860
    %1152 = vmatmul.mubr.f32.gmra.mrb[0].mxu0 %v858
    %v1153 = vpop.f32.mrb[0].mxu0
    %v1154 = vadd.f32 %v1084, %v1153
    %v1155 = vpop.f32.mrb[0].mxu0
    %1156 = vdwg.mxu0
    %1157 = vmatprep.subr.mxu0 0.0
    %1158 = vmatpush1.msra.mxu0 %v801
    %1159 = vmatprep.subr.mxu0 0.0
    %1160 = vmatpush1.msra.mxu0 %v802
    %1161 = vmatprep.subr.mxu0 0.0
    %1162 = vmatpush1.msra.mxu0 %v803
    %1163 = vmatprep.subr.mxu0 0.0
    %1164 = vmatpush1.msra.mxu0 %v804
    %1165 = vmatprep.subr.mxu0 0.0
    %1166 = vmatpush1.msra.mxu0 %v805
    %1167 = vmatprep.subr.mxu0 0.0
    %1168 = vmatpush1.msra.mxu0 %v806
    %1169 = vmatprep.subr.mxu0 0.0
    %1170 = vmatpush1.msra.mxu0 %v807
    %1171 = vmatprep.subr.mxu0 0.0
    %1172 = vmatpush1.msra.mxu0 %v808
    %1173 = vmatprep.subr.mxu0 0.0
    %1174 = vmatpush1.msra.mxu0 %v809
    %1175 = vmatprep.subr.mxu0 0.0
    %1176 = vmatpush1.msra.mxu0 %v810
    %1177 = vmatprep.subr.mxu0 0.0
    %1178 = vmatpush1.msra.mxu0 %v811
    %1179 = vmatprep.subr.mxu0 0.0
    %1180 = vmatpush1.msra.mxu0 %v812
    %1181 = vmatprep.subr.mxu0 0.0
    %1182 = vmatpush1.msra.mxu0 %v813
    %1183 = vmatprep.subr.mxu0 0.0
    %1184 = vmatpush1.msra.mxu0 %v814
    %1185 = vmatprep.subr.mxu0 0.0
    %1186 = vmatpush1.msra.mxu0 %v815
    %1187 = vmatprep.subr.mxu0 0.0
    %1188 = vmatpush1.msra.mxu0 %v816
    %1189 = vmatprep.subr.mxu0 0.0
    %1190 = vmatpush1.msra.mxu0 0.0
    %1191 = vmatprep.subr.mxu0 0.0
    %1192 = vmatpush1.msra.mxu0 0.0
    %1193 = vmatprep.subr.mxu0 0.0
    %1194 = vmatpush1.msra.mxu0 0.0
    %1195 = vmatprep.subr.mxu0 0.0
    %1196 = vmatpush1.msra.mxu0 0.0
    %1197 = vmatprep.subr.mxu0 0.0
    %1198 = vmatpush1.msra.mxu0 0.0
    %1199 = vmatprep.subr.mxu0 0.0
    %1200 = vmatpush1.msra.mxu0 0.0
    %1201 = vmatprep.subr.mxu0 0.0
    %1202 = vmatpush1.msra.mxu0 0.0
    %1203 = vmatprep.subr.mxu0 0.0
    %1204 = vmatpush1.msra.mxu0 0.0
    %1205 = vmatprep.subr.mxu0 0.0
    %1206 = vmatpush1.msra.mxu0 0.0
    %1207 = vmatprep.subr.mxu0 0.0
    %1208 = vmatpush1.msra.mxu0 0.0
    %1209 = vmatprep.subr.mxu0 0.0
    %1210 = vmatpush1.msra.mxu0 0.0
    %1211 = vmatprep.subr.mxu0 0.0
    %1212 = vmatpush1.msra.mxu0 0.0
    %1213 = vmatprep.subr.mxu0 0.0
    %1214 = vmatpush1.msra.mxu0 0.0
    %1215 = vmatprep.subr.mxu0 0.0
    %1216 = vmatpush1.msra.mxu0 0.0
    %1217 = vmatprep.subr.mxu0 0.0
    %1218 = vmatpush1.msra.mxu0 0.0
    %1219 = vmatprep.subr.mxu0 0.0
    %1220 = vmatpush1.msra.mxu0 0.0
    %1221 = vmatprep.mubr.f32.mxu0 0.0
    %1222 = vmatmul.mubr.f32.gmra.mrb[0].mxu0 %v867
    %v1223 = vpop.f32.mrb[0].mxu0
    %v1224 = vadd.f32 %v1154, %v1223
    %v1225 = vpop.f32.mrb[0].mxu0
    %1226 = vdwg.mxu0
    %v1227 = vtanh.pop %v1224
    %v1228 = vld [vmem:[%s7] sm:$0xff]
    %v1229 = vld [vmem:[%s7 + $0x8] sm:$0xff]
    %v1230 = vld [vmem:[%s7 + $0x10] sm:$0xff]
    %v1231 = vld [vmem:[%s7 + $0x18] sm:$0xff]
    %v1232 = vld [vmem:[%s7 + $0x20] sm:$0xff]
    %v1233 = vld [vmem:[%s7 + $0x28] sm:$0xff]
    %v1234 = vld [vmem:[%s7 + $0x30] sm:$0xff]
    %v1235 = vld [vmem:[%s7 + $0x38] sm:$0xff]
    %v1236 = vld [vmem:[%s7 + $0x40] sm:$0xff]
    %v1237 = vld [vmem:[%s7 + $0x48] sm:$0xff]
    %v1238 = vld [vmem:[%s7 + $0x50] sm:$0xff]
    %v1239 = vld [vmem:[%s7 + $0x58] sm:$0xff]
    %v1240 = vld [vmem:[%s7 + $0x60] sm:$0xff]
    %v1241 = vld [vmem:[%s7 + $0x68] sm:$0xff]
    %v1242 = vld [vmem:[%s7 + $0x70] sm:$0xff]
    %v1243 = vld [vmem:[%s7 + $0x78] sm:$0xff]
    %v1244 = vld [vmem:[%s8] sm:$0x1]
    %v1246 = vlaneseq
    %v1247 = vshrl.u32 %v1246, 7
    %v1248 = vsub.s32 0, %v1247
    %v1249 = vrot.slane %v1244, %v1248
    %1251 = vmatprep.subr.mxu0 0.0
    %1252 = vmatpush1.msra.mxu0 %v1228
    %1253 = vmatprep.subr.mxu0 0.0
    %1254 = vmatpush1.msra.mxu0 %v1229
    %1255 = vmatprep.subr.mxu0 0.0
    %1256 = vmatpush1.msra.mxu0 %v1230
    %1257 = vmatprep.subr.mxu0 0.0
    %1258 = vmatpush1.msra.mxu0 %v1231
    %1259 = vmatprep.subr.mxu0 0.0
    %1260 = vmatpush1.msra.mxu0 %v1232
    %1261 = vmatprep.subr.mxu0 0.0
    %1262 = vmatpush1.msra.mxu0 %v1233
    %1263 = vmatprep.subr.mxu0 0.0
    %1264 = vmatpush1.msra.mxu0 %v1234
    %1265 = vmatprep.subr.mxu0 0.0
    %1266 = vmatpush1.msra.mxu0 %v1235
    %1267 = vmatprep.subr.mxu0 0.0
    %1268 = vmatpush1.msra.mxu0 %v1236
    %1269 = vmatprep.subr.mxu0 0.0
    %1270 = vmatpush1.msra.mxu0 %v1237
    %1271 = vmatprep.subr.mxu0 0.0
    %1272 = vmatpush1.msra.mxu0 %v1238
    %1273 = vmatprep.subr.mxu0 0.0
    %1274 = vmatpush1.msra.mxu0 %v1239
    %1275 = vmatprep.subr.mxu0 0.0
    %1276 = vmatpush1.msra.mxu0 %v1240
    %1277 = vmatprep.subr.mxu0 0.0
    %1278 = vmatpush1.msra.mxu0 %v1241
    %1279 = vmatprep.subr.mxu0 0.0
    %1280 = vmatpush1.msra.mxu0 %v1242
    %1281 = vmatprep.subr.mxu0 0.0
    %1282 = vmatpush1.msra.mxu0 %v1243
    %1283 = vmatprep.subr.mxu0 0.0
    %1284 = vmatpush1.msra.mxu0 0.0
    %1285 = vmatprep.subr.mxu0 0.0
    %1286 = vmatpush1.msra.mxu0 0.0
    %1287 = vmatprep.subr.mxu0 0.0
    %1288 = vmatpush1.msra.mxu0 0.0
    %1289 = vmatprep.subr.mxu0 0.0
    %1290 = vmatpush1.msra.mxu0 0.0
    %1291 = vmatprep.subr.mxu0 0.0
    %1292 = vmatpush1.msra.mxu0 0.0
    %1293 = vmatprep.subr.mxu0 0.0
    %1294 = vmatpush1.msra.mxu0 0.0
    %1295 = vmatprep.subr.mxu0 0.0
    %1296 = vmatpush1.msra.mxu0 0.0
    %1297 = vmatprep.subr.mxu0 0.0
    %1298 = vmatpush1.msra.mxu0 0.0
    %1299 = vmatprep.subr.mxu0 0.0
    %1300 = vmatpush1.msra.mxu0 0.0
    %1301 = vmatprep.subr.mxu0 0.0
    %1302 = vmatpush1.msra.mxu0 0.0
    %1303 = vmatprep.subr.mxu0 0.0
    %1304 = vmatpush1.msra.mxu0 0.0
    %1305 = vmatprep.subr.mxu0 0.0
    %1306 = vmatpush1.msra.mxu0 0.0
    %1307 = vmatprep.subr.mxu0 0.0
    %1308 = vmatpush1.msra.mxu0 0.0
    %1309 = vmatprep.subr.mxu0 0.0
    %1310 = vmatpush1.msra.mxu0 0.0
    %1311 = vmatprep.subr.mxu0 0.0
    %1312 = vmatpush1.msra.mxu0 0.0
    %1313 = vmatprep.subr.mxu0 0.0
    %1314 = vmatpush1.msra.mxu0 0.0
    %1315 = vmatprep.mubr.f32.mxu0 0.0
    %1316 = vmatmul.mubr.f32.gmra.mrb[0].mxu0 %v1227
    %v1317 = vpop.f32.mrb[0].mxu0
    %v1318 = vadd.f32 %v1249, %v1317
    %v1319 = vpop.f32.mrb[0].mxu0
    %1320 = vdwg.mxu0
    %vm1321 = vcmask 517120
    %1322 = vst.msk [vmem:[#allocation3] sm:$0x3] %vm1321, %v1318
    // Predicated region
    $region38: #{forward.1} parent=1 // pred_check
      _
    $region39: #{forward.1} parent=1 // pred_check_branch
      %1324 = sbr.rel (0) target = $region41
    $region40: #{forward.1} parent=1 // pred_region
      %s1326 = ssub.s32 32, 32
      %1327 = vsyncadd [#allocation4], %s1326
      %s1329 = sshll.u32 [#allocation3], 4
      %s1330 = int_to_ptr.vmem [resolvable:$true] %s1329
      %1332 = dma.vmem_to_hbm [thread:$0]  %s1330, 32, %s9, [#allocation4]
    $region41: #{forward.1} parent=1 // pred_fallthru
      _
    // Predicated region
    $region42: #{forward.1} parent=1 // pred_check
      _
    $region43: #{forward.1} parent=1 // pred_check_branch
      %1334 = sbr.rel (0) target = $region45
    $region44: #{forward.1} parent=1 // pred_region
      %1335 = dma.done [#allocation4], 32
    $region45: #{forward.1} parent=1 // pred_fallthru
      _
    %1336 = vsyncpa [#allocation4], 1

</llo_original>
